<compile_context>
chip_gen: v7x
topology: tpu7x:2x2x1
jax: 0.10.0
libtpu: 0.0.40
codegen_flags: <defaults>
</compile_context>

<pallas_src>
import functools

import jax
import jax.numpy as jnp
from jax.experimental import pallas as pl
from jax.experimental.pallas import tpu as pltpu


@functools.lru_cache(maxsize=None)
def _tpu_generation() -> int:
    """Best-effort TPU generation from device_kind (0 if unknown)."""
    try:
        kind = jax.devices()[0].device_kind.lower()
    except Exception:  # pragma: no cover - non-TPU / init failure
        return 0
    for gen in (7, 6, 5, 4):
        if f"v{gen}" in kind or f"tpu{gen}" in kind:
            return gen
    return 0


def _proj_kernel(h_ref, w1t_ref, a_src_ref, a_dst_ref, z_ref, ssrc_ref, sdst_ref):
    # z = h @ W1^T on the MXU: bf16 operands, f32 accumulation.
    z = jnp.dot(h_ref[...], w1t_ref[...], preferred_element_type=jnp.float32)
    # Per-node attention scalars: VPU multiply + lane reduction on the f32
    # accumulator (no 1-lane-wide MXU matmuls).
    ssrc_ref[...] = jnp.sum(z * a_src_ref[...], axis=-1, keepdims=True)   # (TR, 1)
    sdst_ref[...] = jnp.sum(z * a_dst_ref[...], axis=-1, keepdims=True)   # (TR, 1)
    z_ref[...] = z.astype(z_ref.dtype)                                     # bf16 for aggregation


def _attn_kernel(z_ref, ssrc_ref, sdst_ref, mask_ref, out_ref, *, exp_dtype):
    # e[jd, i] = leaky_relu(s_dst[jd] + s_src[i]), masked to -1e30 off-edge.
    e = sdst_ref[...] + ssrc_ref[...]                 # (TD,1)+(1,N) -> (TD,N) f32
    e = jnp.maximum(e, 0.01 * e)                      # exact leaky_relu (slope 0.01)
    e = jnp.where(mask_ref[...] != 0, e, -1e30)       # int8 adjacency applied in-kernel

    # Masked softmax over sources = lane-axis reductions on a row-contiguous tile.
    m = jnp.max(e, axis=-1, keepdims=True)            # (TD, 1)
    p = jnp.exp((e - m).astype(exp_dtype))            # bf16 EUP exp on v6e/v7x
    denom = jnp.sum(p, axis=-1, keepdims=True, dtype=jnp.float32)
    p_mm = p if p.dtype == jnp.bfloat16 else p.astype(jnp.bfloat16)

    # out[jd] = (sum_i p[jd,i] * z[i]) / denom[jd]: MXU matmul (f32 acc) then a
    # cheap (TD, F) scale with the EUP approx reciprocal.
    pz = jnp.dot(p_mm, z_ref[...], preferred_element_type=jnp.float32)
    out_ref[...] = (pz * pl.reciprocal(denom, approx=True)).astype(out_ref.dtype)


@functools.partial(jax.jit, static_argnames=("block_dst", "block_rows"))
def gat_layer(h, w1, a, adj_ds, *, block_dst=128, block_rows=128):
    """GAT forward.

    h      : (N, in_dim)       node features (f32)
    w1     : (out_dim, in_dim) linear1.weight
    a      : (1, 2*out_dim)    linear2.weight ([:, :out] -> src, [:, out:] -> dst)
    adj_ds : (N, N) adjacency in (dst, src) orientation: adj_ds[j, i] = 1 iff edge i -> j
    """
    n, in_dim = h.shape
    out_dim = w1.shape[0]
    assert adj_ds.shape == (n, n)

    block_dst = min(block_dst, n)
    block_rows = min(block_rows, n)
    # int8 mask sublane tile is 32; bf16 z tile is 16.
    assert n % block_dst == 0 and block_dst % 32 == 0
    assert n % block_rows == 0 and block_rows % 16 == 0

    gen = _tpu_generation()
    # bf16 EUP exp only pays off (and is native) on v6e/v7x; keep f32 on v4/v5.
    exp_dtype = jnp.float32 if gen in (4, 5) else jnp.bfloat16
    # 128 MiB parts (v5e/v6e) can take 64 MiB scoped VMEM; keep <= 48 MiB on v7x.
    vmem_limit = (48 if gen >= 7 else 64) * 1024 * 1024

    # ---- layout / dtype plumbing (done once, outside the kernels) ----
    h_bf16 = h.astype(jnp.bfloat16)                   # bf16 MXU operand, halves h stream
    w1t_bf16 = w1.T.astype(jnp.bfloat16)              # (in_dim, out_dim)
    a_src = a[:, :out_dim]                            # (1, out_dim) f32
    a_dst = a[:, out_dim:]                            # (1, out_dim) f32
    mask_ds = (adj_ds != 0).astype(jnp.int8)          # int8 mask: half the N^2 HBM stream

    resident = dict(pipeline_mode=pl.Buffered(1))     # constant-index-map blocks

    # ---- kernel 1: projection + per-node attention scalars (row-tiled) ----
    z, s_src, s_dst = pl.pallas_call(
        _proj_kernel,
        out_shape=(jax.ShapeDtypeStruct((n, out_dim), jnp.bfloat16),   # z
                   jax.ShapeDtypeStruct((n, 1), jnp.float32),          # s_src
                   jax.ShapeDtypeStruct((n, 1), jnp.float32)),         # s_dst
        grid=(n // block_rows,),
        in_specs=[
            pl.BlockSpec((block_rows, in_dim), lambda r: (r, 0)),                 # h tile (streamed)
            pl.BlockSpec((in_dim, out_dim), lambda r: (0, 0), **resident),        # W1^T resident
            pl.BlockSpec((1, out_dim), lambda r: (0, 0), **resident),             # a_src resident
            pl.BlockSpec((1, out_dim), lambda r: (0, 0), **resident),             # a_dst resident
        ],
        out_specs=(
            pl.BlockSpec((block_rows, out_dim), lambda r: (r, 0)),
            pl.BlockSpec((block_rows, 1), lambda r: (r, 0)),
            pl.BlockSpec((block_rows, 1), lambda r: (r, 0)),
        ),
        compiler_params=pltpu.CompilerParams(
            dimension_semantics=(pltpu.PARALLEL,),
            vmem_limit_bytes=vmem_limit,
        ),
    )(h_bf16, w1t_bf16, a_src, a_dst)

    # (N,1) -> (1,N) is a free row-major reshape; presents s_src along lanes so it
    # broadcasts across the (dst, src) tile with no in-kernel transpose.
    s_src_row = s_src.reshape(1, n)

    # ---- kernel 2: masked softmax + aggregation, tiled over destination rows ----
    num_dst_tiles = n // block_dst
    if gen >= 7 and num_dst_tiles % 2 == 0:
        # v7x: 2 TensorCores per chip -> explicitly shard the independent dst axis.
        dst_semantics = (pltpu.CORE_PARALLEL,)
    else:
        dst_semantics = (pltpu.PARALLEL,)

    out = pl.pallas_call(
        functools.partial(_attn_kernel, exp_dtype=exp_dtype),
        out_shape=jax.ShapeDtypeStruct((n, out_dim), jnp.float32),
        grid=(num_dst_tiles,),
        in_specs=[
            # Resident across all dst tiles -> single-buffered.
            pl.BlockSpec((n, out_dim), lambda j: (0, 0), **resident),     # z
            pl.BlockSpec((1, n), lambda j: (0, 0), **resident),           # s_src row
            # Streamed per dst tile (default double-buffered pipeline).
            pl.BlockSpec((block_dst, 1), lambda j: (j, 0)),               # s_dst tile
            pl.BlockSpec((block_dst, n), lambda j: (j, 0)),               # int8 mask tile
        ],
        out_specs=pl.BlockSpec((block_dst, out_dim), lambda j: (j, 0)),
        compiler_params=pltpu.CompilerParams(
            dimension_semantics=dst_semantics,
            vmem_limit_bytes=vmem_limit,
        ),
    )(z, s_src_row, s_dst, mask_ds)
    return out


def gat_ref(h, w1, a, adj_ds):
    """Pure-JAX f32 reference with the module's semantics."""
    out_dim = w1.shape[0]
    z = h @ w1.T
    s_src = z @ a[0, :out_dim]
    s_dst = z @ a[0, out_dim:]
    e = s_dst[:, None] + s_src[None, :]                 # (dst, src)
    e = jnp.where(e >= 0.0, e, 0.01 * e)                # leaky_relu
    e = jnp.where(adj_ds > 0.0, e, -jnp.inf)
    alpha = jax.nn.softmax(e, axis=-1)
    return alpha @ z


if __name__ == "__main__":
    N, IN_DIM, OUT_DIM = 256, 32, 128   # lane-dense feature axis; 2 dst tiles of 128

    key = jax.random.PRNGKey(0)
    k_h, k_w1, k_a = jax.random.split(key, 3)

    h = jax.random.normal(k_h, (N, IN_DIM), dtype=jnp.float32)
    # linear1.weight : (out_dim, in_dim)
    w1 = jax.random.normal(k_w1, (OUT_DIM, IN_DIM), dtype=jnp.float32) * 0.1
    # linear2.weight : (1, 2*out_dim)
    a = jax.random.normal(k_a, (1, 2 * OUT_DIM), dtype=jnp.float32) * 0.1

    # Graph: ring + self-loops, (dst, src) orientation: adj_ds[j, i] = 1 iff edge i -> j.
    idx = jnp.arange(N)
    adj_ds = jnp.zeros((N, N), dtype=jnp.float32)
    adj_ds = adj_ds.at[idx, idx].set(1.0)               # self-loops
    adj_ds = adj_ds.at[(idx + 1) % N, idx].set(1.0)     # edge i -> i+1

    out = jax.block_until_ready(gat_layer(h, w1, a, adj_ds))
    ref = gat_ref(h, w1, a, adj_ds)

    assert out.shape == (N, OUT_DIM)
    err = float(jnp.max(jnp.abs(out - ref)))
    # Tolerance loosened for bf16 matmul operands, bf16 exp and approx reciprocal.
    assert jnp.allclose(out, ref, atol=5e-2, rtol=5e-2), f"max abs err {err}"
    print("KERNEL_OK")
</pallas_src>

<mosaic_0001>
module attributes {stable_mosaic.version = 11 : i64} {
  func.func @_attn_kernel(%arg0: i32, %arg1: memref<256x128xbf16, #tpu.memory_space<vmem>>, %arg2: memref<1x256xf32, #tpu.memory_space<vmem>>, %arg3: memref<128x1xf32, #tpu.memory_space<vmem>>, %arg4: memref<128x256xi8, #tpu.memory_space<vmem>>, %arg5: memref<128x128xf32, #tpu.memory_space<vmem>>) attributes {dimension_semantics = [#tpu.dimension_semantics<parallel>], iteration_bounds = array<i64: 2>, scalar_prefetch = 0 : i64, scratch_operands = 0 : i64, tpu.core_type = #tpu.core_type<tc>, window_params = [{pipeline_mode = #tpu.pipeline_mode<synchronous>, transform_indices = @transform_0, window_bounds = array<i64: 256, 128>}, {pipeline_mode = #tpu.pipeline_mode<synchronous>, transform_indices = @transform_1, window_bounds = array<i64: 1, 256>}, {transform_indices = @transform_2, window_bounds = array<i64: 128, 1>}, {transform_indices = @transform_3, window_bounds = array<i64: 128, 256>}, {transform_indices = @transform_4, window_bounds = array<i64: 128, 128>}]} {
    %c0 = arith.constant 0 : index
    %c0_0 = arith.constant 0 : index
    %0 = vector.load %arg3[%c0, %c0_0] : memref<128x1xf32, #tpu.memory_space<vmem>>, vector<128x1xf32>
    %c0_1 = arith.constant 0 : index
    %c0_2 = arith.constant 0 : index
    %1 = vector.load %arg2[%c0_1, %c0_2] : memref<1x256xf32, #tpu.memory_space<vmem>>, vector<1x256xf32>
    %2 = vector.broadcast %0 : vector<128x1xf32> to vector<128x256xf32>
    %3 = vector.broadcast %1 : vector<1x256xf32> to vector<128x256xf32>
    %4 = arith.addf %2, %3 : vector<128x256xf32>
    %cst = arith.constant 0.00999999977 : f32
    %5 = vector.broadcast %cst : f32 to vector<128x256xf32>
    %6 = arith.mulf %5, %4 : vector<128x256xf32>
    %7 = arith.maximumf %4, %6 : vector<128x256xf32>
    %c0_3 = arith.constant 0 : index
    %c0_4 = arith.constant 0 : index
    %8 = vector.load %arg4[%c0_3, %c0_4] : memref<128x256xi8, #tpu.memory_space<vmem>>, vector<128x256xi8>
    %c0_i8 = arith.constant 0 : i8
    %9 = vector.broadcast %c0_i8 : i8 to vector<128x256xi8>
    %10 = arith.cmpi ne, %8, %9 : vector<128x256xi8>
    %cst_5 = arith.constant -1.000000e+30 : f32
    %11 = vector.broadcast %cst_5 : f32 to vector<128x256xf32>
    %12 = arith.select %10, %7, %11 : vector<128x256xi1>, vector<128x256xf32>
    %cst_6 = arith.constant dense<0xFF800000> : vector<128xf32>
    %13 = vector.multi_reduction <maximumf>, %12, %cst_6 [1] : vector<128x256xf32> to vector<128xf32>
    %14 = vector.shape_cast %13 : vector<128xf32> to vector<128x1xf32>
    %15 = vector.broadcast %14 : vector<128x1xf32> to vector<128x256xf32>
    %16 = arith.subf %12, %15 : vector<128x256xf32>
    %17 = arith.truncf %16 : vector<128x256xf32> to vector<128x256xbf16>
    %18 = math.exp %17 : vector<128x256xbf16>
    %19 = arith.extf %18 : vector<128x256xbf16> to vector<128x256xf32>
    %cst_7 = arith.constant dense<0.000000e+00> : vector<128xf32>
    %20 = vector.multi_reduction <add>, %19, %cst_7 [1] : vector<128x256xf32> to vector<128xf32>
    %21 = vector.shape_cast %20 : vector<128xf32> to vector<128x1xf32>
    %c0_8 = arith.constant 0 : index
    %c0_9 = arith.constant 0 : index
    %22 = vector.load %arg1[%c0_8, %c0_9] : memref<256x128xbf16, #tpu.memory_space<vmem>>, vector<256x128xbf16>
    %cst_10 = arith.constant dense<0.000000e+00> : vector<128x128xf32>
    %23 = tpu.matmul %18, %22, %cst_10 {dimension_numbers = #tpu.dot_dimension_numbers<[1], [0], [0], [1], [0, 0, 1, 1], [], []>} : vector<128x256xbf16>, vector<256x128xbf16>, vector<128x128xf32> -> vector<128x128xf32>
    %24 = tpu.reciprocal %21 {approx = true} : vector<128x1xf32> -> vector<128x1xf32>
    %25 = vector.broadcast %24 : vector<128x1xf32> to vector<128x128xf32>
    %26 = arith.mulf %23, %25 : vector<128x128xf32>
    %c0_11 = arith.constant 0 : index
    %c0_12 = arith.constant 0 : index
    %27 = vector.load %arg5[%c0_11, %c0_12] : memref<128x128xf32, #tpu.memory_space<vmem>>, vector<128x128xf32>
    tpu.vector_store %arg5[%c0_11, %c0_12], %26 {strides = array<i32>} : memref<128x128xf32, #tpu.memory_space<vmem>>, vector<128x128xf32>,
    return
  }
  func.func @transform_0(%arg0: i32) -> (i32, i32) {
    %c0_i32 = arith.constant 0 : i32
    %c0_i32_0 = arith.constant 0 : i32
    %c0_i32_1 = arith.constant 0 : i32
    return %c0_i32, %c0_i32_0 : i32, i32
  }
  func.func @transform_1(%arg0: i32) -> (i32, i32) {
    %c0_i32 = arith.constant 0 : i32
    %c0_i32_0 = arith.constant 0 : i32
    %c0_i32_1 = arith.constant 0 : i32
    return %c0_i32, %c0_i32_0 : i32, i32
  }
  func.func @transform_2(%arg0: i32) -> (i32, i32) {
    %c0_i32 = arith.constant 0 : i32
    %c0_i32_0 = arith.constant 0 : i32
    return %arg0, %c0_i32 : i32, i32
  }
  func.func @transform_3(%arg0: i32) -> (i32, i32) {
    %c0_i32 = arith.constant 0 : i32
    %c0_i32_0 = arith.constant 0 : i32
    return %arg0, %c0_i32 : i32, i32
  }
  func.func @transform_4(%arg0: i32) -> (i32, i32) {
    %c0_i32 = arith.constant 0 : i32
    %c0_i32_0 = arith.constant 0 : i32
    return %arg0, %c0_i32 : i32, i32
  }
}

module attributes {stable_mosaic.version = 11 : i64} {
  func.func @_proj_kernel(%arg0: i32, %arg1: memref<128x32xbf16, #tpu.memory_space<vmem>>, %arg2: memref<32x128xbf16, #tpu.memory_space<vmem>>, %arg3: memref<1x128xf32, #tpu.memory_space<vmem>>, %arg4: memref<1x128xf32, #tpu.memory_space<vmem>>, %arg5: memref<128x128xbf16, #tpu.memory_space<vmem>>, %arg6: memref<128x1xf32, #tpu.memory_space<vmem>>, %arg7: memref<128x1xf32, #tpu.memory_space<vmem>>) attributes {dimension_semantics = [#tpu.dimension_semantics<parallel>], iteration_bounds = array<i64: 2>, scalar_prefetch = 0 : i64, scratch_operands = 0 : i64, tpu.core_type = #tpu.core_type<tc>, window_params = [{transform_indices = @transform_0, window_bounds = array<i64: 128, 32>}, {pipeline_mode = #tpu.pipeline_mode<synchronous>, transform_indices = @transform_1, window_bounds = array<i64: 32, 128>}, {pipeline_mode = #tpu.pipeline_mode<synchronous>, transform_indices = @transform_2, window_bounds = array<i64: 1, 128>}, {pipeline_mode = #tpu.pipeline_mode<synchronous>, transform_indices = @transform_3, window_bounds = array<i64: 1, 128>}, {transform_indices = @transform_4, window_bounds = array<i64: 128, 128>}, {transform_indices = @transform_5, window_bounds = array<i64: 128, 1>}, {transform_indices = @transform_6, window_bounds = array<i64: 128, 1>}]} {
    %c0 = arith.constant 0 : index
    %c0_0 = arith.constant 0 : index
    %0 = vector.load %arg1[%c0, %c0_0] : memref<128x32xbf16, #tpu.memory_space<vmem>>, vector<128x32xbf16>
    %c0_1 = arith.constant 0 : index
    %c0_2 = arith.constant 0 : index
    %1 = vector.load %arg2[%c0_1, %c0_2] : memref<32x128xbf16, #tpu.memory_space<vmem>>, vector<32x128xbf16>
    %cst = arith.constant dense<0.000000e+00> : vector<128x128xf32>
    %2 = tpu.matmul %0, %1, %cst {dimension_numbers = #tpu.dot_dimension_numbers<[1], [0], [0], [1], [0, 0, 1, 1], [], []>} : vector<128x32xbf16>, vector<32x128xbf16>, vector<128x128xf32> -> vector<128x128xf32>
    %c0_3 = arith.constant 0 : index
    %c0_4 = arith.constant 0 : index
    %3 = vector.load %arg3[%c0_3, %c0_4] : memref<1x128xf32, #tpu.memory_space<vmem>>, vector<1x128xf32>
    %4 = vector.broadcast %3 : vector<1x128xf32> to vector<128x128xf32>
    %5 = arith.mulf %2, %4 : vector<128x128xf32>
    %cst_5 = arith.constant dense<0.000000e+00> : vector<128xf32>
    %6 = vector.multi_reduction <add>, %5, %cst_5 [1] : vector<128x128xf32> to vector<128xf32>
    %7 = vector.shape_cast %6 : vector<128xf32> to vector<128x1xf32>
    %c0_6 = arith.constant 0 : index
    %c0_7 = arith.constant 0 : index
    %8 = vector.load %arg6[%c0_6, %c0_7] : memref<128x1xf32, #tpu.memory_space<vmem>>, vector<128x1xf32>
    tpu.vector_store %arg6[%c0_6, %c0_7], %7 {strides = array<i32>} : memref<128x1xf32, #tpu.memory_space<vmem>>, vector<128x1xf32>,
    %c0_8 = arith.constant 0 : index
    %c0_9 = arith.constant 0 : index
    %9 = vector.load %arg4[%c0_8, %c0_9] : memref<1x128xf32, #tpu.memory_space<vmem>>, vector<1x128xf32>
    %10 = vector.broadcast %9 : vector<1x128xf32> to vector<128x128xf32>
    %11 = arith.mulf %2, %10 : vector<128x128xf32>
    %cst_10 = arith.constant dense<0.000000e+00> : vector<128xf32>
    %12 = vector.multi_reduction <add>, %11, %cst_10 [1] : vector<128x128xf32> to vector<128xf32>
    %13 = vector.shape_cast %12 : vector<128xf32> to vector<128x1xf32>
    %c0_11 = arith.constant 0 : index
    %c0_12 = arith.constant 0 : index
    %14 = vector.load %arg7[%c0_11, %c0_12] : memref<128x1xf32, #tpu.memory_space<vmem>>, vector<128x1xf32>
    tpu.vector_store %arg7[%c0_11, %c0_12], %13 {strides = array<i32>} : memref<128x1xf32, #tpu.memory_space<vmem>>, vector<128x1xf32>,
    %15 = arith.truncf %2 : vector<128x128xf32> to vector<128x128xbf16>
    %c0_13 = arith.constant 0 : index
    %c0_14 = arith.constant 0 : index
    %16 = vector.load %arg5[%c0_13, %c0_14] : memref<128x128xbf16, #tpu.memory_space<vmem>>, vector<128x128xbf16>
    tpu.vector_store %arg5[%c0_13, %c0_14], %15 {strides = array<i32>} : memref<128x128xbf16, #tpu.memory_space<vmem>>, vector<128x128xbf16>,
    return
  }
  func.func @transform_0(%arg0: i32) -> (i32, i32) {
    %c0_i32 = arith.constant 0 : i32
    %c0_i32_0 = arith.constant 0 : i32
    return %arg0, %c0_i32 : i32, i32
  }
  func.func @transform_1(%arg0: i32) -> (i32, i32) {
    %c0_i32 = arith.constant 0 : i32
    %c0_i32_0 = arith.constant 0 : i32
    %c0_i32_1 = arith.constant 0 : i32
    return %c0_i32, %c0_i32_0 : i32, i32
  }
  func.func @transform_2(%arg0: i32) -> (i32, i32) {
    %c0_i32 = arith.constant 0 : i32
    %c0_i32_0 = arith.constant 0 : i32
    %c0_i32_1 = arith.constant 0 : i32
    return %c0_i32, %c0_i32_0 : i32, i32
  }
  func.func @transform_3(%arg0: i32) -> (i32, i32) {
    %c0_i32 = arith.constant 0 : i32
    %c0_i32_0 = arith.constant 0 : i32
    %c0_i32_1 = arith.constant 0 : i32
    return %c0_i32, %c0_i32_0 : i32, i32
  }
  func.func @transform_4(%arg0: i32) -> (i32, i32) {
    %c0_i32 = arith.constant 0 : i32
    %c0_i32_0 = arith.constant 0 : i32
    return %arg0, %c0_i32 : i32, i32
  }
  func.func @transform_5(%arg0: i32) -> (i32, i32) {
    %c0_i32 = arith.constant 0 : i32
    %c0_i32_0 = arith.constant 0 : i32
    return %arg0, %c0_i32 : i32, i32
  }
  func.func @transform_6(%arg0: i32) -> (i32, i32) {
    %c0_i32 = arith.constant 0 : i32
    %c0_i32_0 = arith.constant 0 : i32
    return %arg0, %c0_i32 : i32, i32
  }
}

</mosaic_0001>

<llo_original>
// kernel: gat_layer.3
$region0: #{gat_layer.3}
  #allocation0 [shape = 'u32[]', space=smem, size = 0x4, offset = 0x4, fixed_abs, tag = 'smem constant byte address 0x4 - core index']
  #allocation1 [shape = 'u32[144,128]{1,0:T(1,128)}', space=vmem, size = 0x12000, scoped, tag = 'internal scratch']
  %s0 = inlined_call_operand.hbm [shape: bf16[256,128], index: 0, kind: input, shape index: {}]
  %s1 = inlined_call_operand.hbm [shape: f32[1,256], index: 1, kind: input, shape index: {}]
  %s2 = inlined_call_operand.hbm [shape: f32[256,1], index: 2, kind: input, shape index: {}]
  %s3 = inlined_call_operand.hbm [shape: s8[256,256], index: 3, kind: input, shape index: {}]
  %s4 = inlined_call_operand.hbm [shape: f32[256,128], index: 4, kind: output, shape index: {}]
  %s5 = sld [smem:[#allocation0]]
  $region65: #{gat_layer.3} parent=0
    _
  %s7 = ssub.s32 1, %s5
  %s8 = scalar_select 0, %s7, %s5
  $region1: #{gat_layer.3} parent=0
    #allocation2 [shape = 'u8[65536]{0}', space=vmem, size = 0x10000, scoped, tag = 'input window, operand 0, single buffered']
    #allocation3 [shape = 's32[2]{0}', space=sflag, size = 0x8, scoped, tag = 'scoped memory for gat_layer.3']
    #allocation4 [shape = 's32[2]{0}', space=sflag, size = 0x8, scoped, tag = 'scoped memory for gat_layer.3']
    #allocation5 [shape = 'u8[1024]{0}', space=vmem, size = 0x400, scoped, tag = 'input window, operand 1, single buffered']
    #allocation6 [shape = 's32[1]{0}', space=sflag, size = 0x4, scoped, tag = 'scoped memory for gat_layer.3']
    #allocation7 [shape = 'u8[131072]{0}', space=vmem, size = 0x20000, scoped, tag = 'input window, operand 2']
    #allocation8 [shape = 'u8[65536]{0}', space=vmem, size = 0x10000, scoped, tag = 'input window, operand 3']
    #allocation9 [shape = 'u8[131072]{0}', space=vmem, size = 0x20000, scoped, tag = 'output window, operand 0']
    %9 = vsyncpa [#allocation3], 0
    %10 = vsyncpa [#allocation6], 0
    %11 = vsyncpa [#allocation4], 0
    %s12 = scalar_lea.sflag [#allocation4], 1
    %13 = vsyncpa %s12, 0
    loop: start=0, step=1, limit=4
    $region2: #{gat_layer.3} parent=1 // loop_pre_header
      _
    $region3: #{gat_layer.3} parent=1 // loop_header
      %s15 = sphi 0, %s19
      %p16 = scmp.ge.s32.totalorder %s15, 4
      %s23 = sphi 0, %s23
      %s25 = sphi 0, %s23
      %s26 = sphi 0, %s25
      %s40 = sphi 0, %s26
      %s44 = sphi 0, %s44
      %s46 = sphi 0, %s44
      %s47 = sphi 0, %s46
      %s61 = sphi 0, %s47
      %s67 = sphi 0, %s69
      %s70 = sphi 0, %s67
      %s71 = sphi 0, %s70
      %s87 = sphi 0, %s71
      %s93 = sphi 0, %s95
      %s96 = sphi 0, %s93
      %s97 = sphi 0, %s96
      %s113 = sphi 0, %s97
      %s119 = sphi 0, %s121
      %s122 = sphi 0, %s119
      %s123 = sphi 0, %s122
      %s139 = sphi 0, %s123
    $region4: #{gat_layer.3} parent=1 // loop_header_branch
      %18 = sbr.rel (%p16) target = $region8
    $region5: #{gat_layer.3} parent=1 // loop_body
      %s20 = ssub.s32 %s15, 1
      %s21 = ssub.s32 %s15, 2
      %s22 = sadd.s32 %s15, 1
      %s24 = sadd.s32 %s23, 1
      %p27 = scmp.eq.s32.totalorder %s15, 1
      %p28 = scmp.ne.s32.totalorder %s23, %s25
      %p29 = scmp.eq.s32.totalorder %s15, 0
      %p30 = por %p28, %p29
      %p31 = scmp.ne.s32.totalorder %s23, %s25
      %p32 = scmp.eq.s32.totalorder %s20, 1
      %p33 = por %p31, %p32
      %p34 = scmp.ne.s32.totalorder %s25, %s26
      %p35 = scmp.eq.s32.totalorder %s20, 0
      %p36 = por %p34, %p35
      %p37 = scmp.ne.s32.totalorder %s25, %s26
      %p38 = scmp.eq.s32.totalorder %s21, 1
      %p39 = por %p37, %p38
      %p41 = scmp.ne.s32.totalorder %s26, %s40
      %p42 = scmp.eq.s32.totalorder %s21, 0
      %p43 = por %p41, %p42
      %s45 = sadd.s32 %s44, 1
      %p48 = scmp.eq.s32.totalorder %s15, 1
      %p49 = scmp.ne.s32.totalorder %s44, %s46
      %p50 = scmp.eq.s32.totalorder %s15, 0
      %p51 = por %p49, %p50
      %p52 = scmp.ne.s32.totalorder %s44, %s46
      %p53 = scmp.eq.s32.totalorder %s20, 1
      %p54 = por %p52, %p53
      %p55 = scmp.ne.s32.totalorder %s46, %s47
      %p56 = scmp.eq.s32.totalorder %s20, 0
      %p57 = por %p55, %p56
      %p58 = scmp.ne.s32.totalorder %s46, %s47
      %p59 = scmp.eq.s32.totalorder %s21, 1
      %p60 = por %p58, %p59
      %p62 = scmp.ne.s32.totalorder %s47, %s61
      %p63 = scmp.eq.s32.totalorder %s21, 0
      %p64 = por %p62, %p63
      %s65 = ssub.s32 %s15, %s22
      %p66 = scmp.eq.s32.totalorder %s65, 0
      %s68 = sadd.s32 %s67, 1
      %s69 = scalar_select %p66, %s67, %s68
      %p72 = pneg %p66
      %p73 = scmp.eq.s32.totalorder %s15, 1
      %p74 = por %p72, %p73
      %p75 = scmp.ne.s32.totalorder %s67, %s70
      %p76 = scmp.eq.s32.totalorder %s15, 0
      %p77 = por %p75, %p76
      %p78 = scmp.ne.s32.totalorder %s67, %s70
      %p79 = scmp.eq.s32.totalorder %s20, 1
      %p80 = por %p78, %p79
      %p81 = scmp.ne.s32.totalorder %s70, %s71
      %p82 = scmp.eq.s32.totalorder %s20, 0
      %p83 = por %p81, %p82
      %p84 = scmp.ne.s32.totalorder %s70, %s71
      %p85 = scmp.eq.s32.totalorder %s21, 1
      %p86 = por %p84, %p85
      %p88 = scmp.ne.s32.totalorder %s71, %s87
      %p89 = scmp.eq.s32.totalorder %s21, 0
      %p90 = por %p88, %p89
      %s91 = ssub.s32 %s15, %s22
      %p92 = scmp.eq.s32.totalorder %s91, 0
      %s94 = sadd.s32 %s93, 1
      %s95 = scalar_select %p92, %s93, %s94
      %p98 = pneg %p92
      %p99 = scmp.eq.s32.totalorder %s15, 1
      %p100 = por %p98, %p99
      %p101 = scmp.ne.s32.totalorder %s93, %s96
      %p102 = scmp.eq.s32.totalorder %s15, 0
      %p103 = por %p101, %p102
      %p104 = scmp.ne.s32.totalorder %s93, %s96
      %p105 = scmp.eq.s32.totalorder %s20, 1
      %p106 = por %p104, %p105
      %p107 = scmp.ne.s32.totalorder %s96, %s97
      %p108 = scmp.eq.s32.totalorder %s20, 0
      %p109 = por %p107, %p108
      %p110 = scmp.ne.s32.totalorder %s96, %s97
      %p111 = scmp.eq.s32.totalorder %s21, 1
      %p112 = por %p110, %p111
      %p114 = scmp.ne.s32.totalorder %s97, %s113
      %p115 = scmp.eq.s32.totalorder %s21, 0
      %p116 = por %p114, %p115
      %s117 = ssub.s32 %s15, %s22
      %p118 = scmp.eq.s32.totalorder %s117, 0
      %s120 = sadd.s32 %s119, 1
      %s121 = scalar_select %p118, %s119, %s120
      %p124 = pneg %p118
      %p125 = scmp.eq.s32.totalorder %s15, 1
      %p126 = por %p124, %p125
      %p127 = scmp.ne.s32.totalorder %s119, %s122
      %p128 = scmp.eq.s32.totalorder %s15, 0
      %p129 = por %p127, %p128
      %p130 = scmp.ne.s32.totalorder %s119, %s122
      %p131 = scmp.eq.s32.totalorder %s20, 1
      %p132 = por %p130, %p131
      %p133 = scmp.ne.s32.totalorder %s122, %s123
      %p134 = scmp.eq.s32.totalorder %s20, 0
      %p135 = por %p133, %p134
      %p136 = scmp.ne.s32.totalorder %s122, %s123
      %p137 = scmp.eq.s32.totalorder %s21, 1
      %p138 = por %p136, %p137
      %p140 = scmp.ne.s32.totalorder %s123, %s139
      %p141 = scmp.eq.s32.totalorder %s21, 0
      %p142 = por %p140, %p141
      %p143 = scmp.le.s32.totalorder 1, %s15
      %p144 = scmp.lt.s32.totalorder %s15, 3
      %p145 = pnand %p143, %p144
      %p146 = pneg %p145
      // Predicated region
      $region9: #{gat_layer.3} parent=5 // pred_check
        _
      $region10: #{gat_layer.3} parent=5 // pred_check_branch
        %148 = sbr.rel (%p145) target = $region12
      $region11: #{gat_layer.3} parent=5 // pred_region
        %s149 = ssub.s32 %s15, 1
        // Predicated region
        $region13: #{gat_layer.3} parent=11 // pred_check
          %p150 = pneg %p36
        $region14: #{gat_layer.3} parent=11 // pred_check_branch
          %152 = sbr.rel (%p150) target = $region16
        $region15: #{gat_layer.3} parent=11 // pred_region
          %s154 = ssub.s32 2048, 2048
          %155 = vsyncadd [#allocation3], %s154
          %s156 = sshll.u32 [#allocation2], 4
          %s157 = int_to_ptr.vmem [resolvable:$true] %s156
          %162 = dma.hbm_to_vmem [thread:$0]  %s0, 2048, %s157, [#allocation3], 64, 64, 4
        $region16: #{gat_layer.3} parent=11 // pred_fallthru
          _
        // Predicated region
        $region17: #{gat_layer.3} parent=11 // pred_check
          %p163 = pneg %p57
        $region18: #{gat_layer.3} parent=11 // pred_check_branch
          %165 = sbr.rel (%p163) target = $region20
        $region19: #{gat_layer.3} parent=11 // pred_region
          %s167 = ssub.s32 32, 32
          %168 = vsyncadd [#allocation6], %s167
          %s170 = sshll.u32 [#allocation5], 4
          %s171 = int_to_ptr.vmem [resolvable:$true] %s170
          %173 = dma.hbm_to_vmem [thread:$0]  %s1, 32, %s171, [#allocation6]
        $region20: #{gat_layer.3} parent=11 // pred_fallthru
          _
      $region12: #{gat_layer.3} parent=5 // pred_fallthru
        _
      %p174 = scmp.lt.s32.totalorder %s15, 2
      // Predicated region
      $region21: #{gat_layer.3} parent=5 // pred_check
        %p175 = pneg %p174
      $region22: #{gat_layer.3} parent=5 // pred_check_branch
        %177 = sbr.rel (%p175) target = $region24
      $region23: #{gat_layer.3} parent=5 // pred_region
        // Predicated region
        $region25: #{gat_layer.3} parent=23 // pred_check
          %p178 = pneg %p77
        $region26: #{gat_layer.3} parent=23 // pred_check_branch
          %180 = sbr.rel (%p178) target = $region28
        $region27: #{gat_layer.3} parent=23 // pred_region
          %s181 = sand.u32 %s15, 1
          %s182 = scalar_lea.sflag [#allocation3], %s181
          %s183 = sand.u32 %s67, 1
          %s184 = smul.addr %s183, 128
          %s185 = scalar_lea.vmem [#allocation7], %s184
          %s186 = smul.u32 16, %s15
          %s188 = ssub.s32 2048, 2048
          %189 = vsyncadd %s182, %s188
          %s190 = smul.addr %s186, 128
          %s191 = scalar_lea.hbm %s2, %s190
          %s192 = sshll.u32 %s185, 4
          %s193 = int_to_ptr.vmem [resolvable:$true] %s192
          %198 = dma.hbm_to_vmem [thread:$0]  %s191, 2048, %s193, %s182, 128, 128, 8
        $region28: #{gat_layer.3} parent=23 // pred_fallthru
          _
        // Predicated region
        $region29: #{gat_layer.3} parent=23 // pred_check
          %p199 = pneg %p103
        $region30: #{gat_layer.3} parent=23 // pred_check_branch
          %201 = sbr.rel (%p199) target = $region32
        $region31: #{gat_layer.3} parent=23 // pred_region
          %s202 = sand.u32 %s15, 1
          %s203 = scalar_lea.sflag [#allocation3], %s202
          %s204 = sand.u32 %s93, 1
          %s205 = smul.addr %s204, 64
          %s206 = scalar_lea.vmem [#allocation8], %s205
          %s207 = smul.u32 4, %s15
          %s209 = ssub.s32 1024, 1024
          %210 = vsyncadd %s203, %s209
          %s211 = smul.addr %s207, 2
          %s212 = smul.addr %s211, 128
          %s213 = scalar_lea.hbm %s3, %s212
          %s214 = sshll.u32 %s206, 4
          %s215 = int_to_ptr.vmem [resolvable:$true] %s214
          %220 = dma.hbm_to_vmem [thread:$0]  %s213, 1024, %s215, %s203, 256, 256, 16
        $region32: #{gat_layer.3} parent=23 // pred_fallthru
          _
      $region24: #{gat_layer.3} parent=5 // pred_fallthru
        _
      %p221 = scmp.le.s32.totalorder 1, %s15
      %p222 = scmp.lt.s32.totalorder %s15, 3
      %p223 = pnand %p221, %p222
      %p224 = pneg %p223
      // Predicated region
      $region33: #{gat_layer.3} parent=5 // pred_check
        _
      $region34: #{gat_layer.3} parent=5 // pred_check_branch
        %226 = sbr.rel (%p223) target = $region36
      $region35: #{gat_layer.3} parent=5 // pred_region
        %s227 = ssub.s32 %s15, 1
        // Predicated region
        $region37: #{gat_layer.3} parent=35 // pred_check
          %p228 = pneg %p36
        $region38: #{gat_layer.3} parent=35 // pred_check_branch
          %230 = sbr.rel (%p228) target = $region40
        $region39: #{gat_layer.3} parent=35 // pred_region
          %231 = dma.done [#allocation3], 2048
        $region40: #{gat_layer.3} parent=35 // pred_fallthru
          _
        // Predicated region
        $region41: #{gat_layer.3} parent=35 // pred_check
          %p232 = pneg %p57
        $region42: #{gat_layer.3} parent=35 // pred_check_branch
          %234 = sbr.rel (%p232) target = $region44
        $region43: #{gat_layer.3} parent=35 // pred_region
          %235 = dma.done [#allocation6], 32
        $region44: #{gat_layer.3} parent=35 // pred_fallthru
          _
        %s236 = sand.u32 %s20, 1
        %s237 = scalar_lea.sflag [#allocation3], %s236
        %s238 = sand.u32 %s70, 1
        %s239 = smul.addr %s238, 128
        %s240 = scalar_lea.vmem [#allocation7], %s239
        // Predicated region
        $region45: #{gat_layer.3} parent=35 // pred_check
          %p241 = pneg %p83
        $region46: #{gat_layer.3} parent=35 // pred_check_branch
          %243 = sbr.rel (%p241) target = $region48
        $region47: #{gat_layer.3} parent=35 // pred_region
          %244 = dma.done %s237, 2048
        $region48: #{gat_layer.3} parent=35 // pred_fallthru
          _
        %s245 = sand.u32 %s20, 1
        %s246 = scalar_lea.sflag [#allocation3], %s245
        %s247 = sand.u32 %s96, 1
        %s248 = smul.addr %s247, 64
        %s249 = scalar_lea.vmem [#allocation8], %s248
        // Predicated region
        $region49: #{gat_layer.3} parent=35 // pred_check
          %p250 = pneg %p109
        $region50: #{gat_layer.3} parent=35 // pred_check_branch
          %252 = sbr.rel (%p250) target = $region52
        $region51: #{gat_layer.3} parent=35 // pred_region
          %253 = dma.done %s246, 1024
        $region52: #{gat_layer.3} parent=35 // pred_fallthru
          _
        %p254 = pneg %p36
        %p255 = pneg %p33
        %p256 = pneg %p57
        %p257 = pneg %p54
        %s258 = sand.u32 %s20, 1
        %s259 = scalar_lea.sflag [#allocation3], %s258
        %s260 = sand.u32 %s70, 1
        %s261 = smul.addr %s260, 128
        %s262 = scalar_lea.vmem [#allocation7], %s261
        %p263 = pneg %p83
        %p264 = pneg %p80
        %s265 = sand.u32 %s20, 1
        %s266 = scalar_lea.sflag [#allocation3], %s265
        %s267 = sand.u32 %s96, 1
        %s268 = smul.addr %s267, 64
        %s269 = scalar_lea.vmem [#allocation8], %s268
        %p270 = pneg %p109
        %p271 = pneg %p106
        %p272 = pneg %p135
        %p273 = pneg %p132
        %s274 = sand.u32 %s122, 1
        %s275 = scalar_lea.sflag [#allocation4], %s274
        %s276 = sand.u32 %s122, 1
        %s277 = smul.addr %s276, 128
        %s278 = scalar_lea.vmem [#allocation9], %s277
        %s279 = smul.u32 16, %s20
        %s280 = smul.u32 4, %s20
        %s281 = smul.u32 16, %s20
        %v285 = vld [vmem:[%s240] sm:$0xff]
        %v286 = vld [vmem:[%s240 + $0x8] sm:$0xff]
        %v287 = vld [vmem:[%s240 + $0x10] sm:$0xff]
        %v288 = vld [vmem:[%s240 + $0x18] sm:$0xff]
        %v289 = vld [vmem:[%s240 + $0x20] sm:$0xff]
        %v290 = vld [vmem:[%s240 + $0x28] sm:$0xff]
        %v291 = vld [vmem:[%s240 + $0x30] sm:$0xff]
        %v292 = vld [vmem:[%s240 + $0x38] sm:$0xff]
        %v293 = vld [vmem:[%s240 + $0x40] sm:$0xff]
        %v294 = vld [vmem:[%s240 + $0x48] sm:$0xff]
        %v295 = vld [vmem:[%s240 + $0x50] sm:$0xff]
        %v296 = vld [vmem:[%s240 + $0x58] sm:$0xff]
        %v297 = vld [vmem:[%s240 + $0x60] sm:$0xff]
        %v298 = vld [vmem:[%s240 + $0x68] sm:$0xff]
        %v299 = vld [vmem:[%s240 + $0x70] sm:$0xff]
        %v300 = vld [vmem:[%s240 + $0x78] sm:$0xff]
        %v301 = vld [vmem:[#allocation5] sm:$0x3]
        %303 = vset.pattern.permute.xlu0 0
        %304 = vperm.xlu0 %303, %v285
        %v305 = vpop.permute.xlu0 %304
        %308 = vset.pattern.permute.xlu0 0
        %309 = vperm.xlu0 %308, %v286
        %v310 = vpop.permute.xlu0 %309
        %313 = vset.pattern.permute.xlu0 0
        %314 = vperm.xlu0 %313, %v287
        %v315 = vpop.permute.xlu0 %314
        %318 = vset.pattern.permute.xlu0 0
        %319 = vperm.xlu0 %318, %v288
        %v320 = vpop.permute.xlu0 %319
        %323 = vset.pattern.permute.xlu0 0
        %324 = vperm.xlu0 %323, %v289
        %v325 = vpop.permute.xlu0 %324
        %328 = vset.pattern.permute.xlu0 0
        %329 = vperm.xlu0 %328, %v290
        %v330 = vpop.permute.xlu0 %329
        %333 = vset.pattern.permute.xlu0 0
        %334 = vperm.xlu0 %333, %v291
        %v335 = vpop.permute.xlu0 %334
        %338 = vset.pattern.permute.xlu0 0
        %339 = vperm.xlu0 %338, %v292
        %v340 = vpop.permute.xlu0 %339
        %343 = vset.pattern.permute.xlu0 0
        %344 = vperm.xlu0 %343, %v293
        %v345 = vpop.permute.xlu0 %344
        %348 = vset.pattern.permute.xlu0 0
        %349 = vperm.xlu0 %348, %v294
        %v350 = vpop.permute.xlu0 %349
        %353 = vset.pattern.permute.xlu0 0
        %354 = vperm.xlu0 %353, %v295
        %v355 = vpop.permute.xlu0 %354
        %358 = vset.pattern.permute.xlu0 0
        %359 = vperm.xlu0 %358, %v296
        %v360 = vpop.permute.xlu0 %359
        %363 = vset.pattern.permute.xlu0 0
        %364 = vperm.xlu0 %363, %v297
        %v365 = vpop.permute.xlu0 %364
        %368 = vset.pattern.permute.xlu0 0
        %369 = vperm.xlu0 %368, %v298
        %v370 = vpop.permute.xlu0 %369
        %373 = vset.pattern.permute.xlu0 0
        %374 = vperm.xlu0 %373, %v299
        %v375 = vpop.permute.xlu0 %374
        %378 = vset.pattern.permute.xlu0 0
        %379 = vperm.xlu0 %378, %v300
        %v380 = vpop.permute.xlu0 %379
        %v383 = vlaneseq
        %v384 = vshrl.u32 %v383, 7
        %v385 = vsub.s32 0, %v384
        %v386 = vrot.slane %v301, %v385
        %v387 = vlaneseq
        %v388 = vshrl.u32 %v387, 7
        %v389 = vsub.s32 1, %v388
        %v390 = vrot.slane %v301, %v389
        %v393 = vadd.f32 %v305, %v386
        %v394 = vadd.f32 %v305, %v390
        %v395 = vadd.f32 %v310, %v386
        %v396 = vadd.f32 %v310, %v390
        %v397 = vadd.f32 %v315, %v386
        %v398 = vadd.f32 %v315, %v390
        %v399 = vadd.f32 %v320, %v386
        %v400 = vadd.f32 %v320, %v390
        %v401 = vadd.f32 %v325, %v386
        %v402 = vadd.f32 %v325, %v390
        %v403 = vadd.f32 %v330, %v386
        %v404 = vadd.f32 %v330, %v390
        %v405 = vadd.f32 %v335, %v386
        %v406 = vadd.f32 %v335, %v390
        %v407 = vadd.f32 %v340, %v386
        %v408 = vadd.f32 %v340, %v390
        %v409 = vadd.f32 %v345, %v386
        %v410 = vadd.f32 %v345, %v390
        %v411 = vadd.f32 %v350, %v386
        %v412 = vadd.f32 %v350, %v390
        %v413 = vadd.f32 %v355, %v386
        %v414 = vadd.f32 %v355, %v390
        %v415 = vadd.f32 %v360, %v386
        %v416 = vadd.f32 %v360, %v390
        %v417 = vadd.f32 %v365, %v386
        %v418 = vadd.f32 %v365, %v390
        %v419 = vadd.f32 %v370, %v386
        %v420 = vadd.f32 %v370, %v390
        %v421 = vadd.f32 %v375, %v386
        %v422 = vadd.f32 %v375, %v390
        %v423 = vadd.f32 %v380, %v386
        %v424 = vadd.f32 %v380, %v390
        %v425 = vmul.f32 %v393, 0.01
        %v426 = vmul.f32 %v394, 0.01
        %v427 = vmul.f32 %v395, 0.01
        %v428 = vmul.f32 %v396, 0.01
        %v429 = vmul.f32 %v397, 0.01
        %v430 = vmul.f32 %v398, 0.01
        %v431 = vmul.f32 %v399, 0.01
        %v432 = vmul.f32 %v400, 0.01
        %v433 = vmul.f32 %v401, 0.01
        %v434 = vmul.f32 %v402, 0.01
        %v435 = vmul.f32 %v403, 0.01
        %v436 = vmul.f32 %v404, 0.01
        %v437 = vmul.f32 %v405, 0.01
        %v438 = vmul.f32 %v406, 0.01
        %v439 = vmul.f32 %v407, 0.01
        %v440 = vmul.f32 %v408, 0.01
        %v441 = vmul.f32 %v409, 0.01
        %v442 = vmul.f32 %v410, 0.01
        %v443 = vmul.f32 %v411, 0.01
        %v444 = vmul.f32 %v412, 0.01
        %v445 = vmul.f32 %v413, 0.01
        %v446 = vmul.f32 %v414, 0.01
        %v447 = vmul.f32 %v415, 0.01
        %v448 = vmul.f32 %v416, 0.01
        %v449 = vmul.f32 %v417, 0.01
        %v450 = vmul.f32 %v418, 0.01
        %v451 = vmul.f32 %v419, 0.01
        %v452 = vmul.f32 %v420, 0.01
        %v453 = vmul.f32 %v421, 0.01
        %v454 = vmul.f32 %v422, 0.01
        %v455 = vmul.f32 %v423, 0.01
        %v456 = vmul.f32 %v424, 0.01
        %v457 = vmax.f32 %v393, %v425
        %v458 = vmax.f32 %v394, %v426
        %v459 = vmax.f32 %v395, %v427
        %v460 = vmax.f32 %v396, %v428
        %v461 = vmax.f32 %v397, %v429
        %v462 = vmax.f32 %v398, %v430
        %v463 = vmax.f32 %v399, %v431
        %v464 = vmax.f32 %v400, %v432
        %v465 = vmax.f32 %v401, %v433
        %v466 = vmax.f32 %v402, %v434
        %v467 = vmax.f32 %v403, %v435
        %v468 = vmax.f32 %v404, %v436
        %v469 = vmax.f32 %v405, %v437
        %v470 = vmax.f32 %v406, %v438
        %v471 = vmax.f32 %v407, %v439
        %v472 = vmax.f32 %v408, %v440
        %v473 = vmax.f32 %v409, %v441
        %v474 = vmax.f32 %v410, %v442
        %v475 = vmax.f32 %v411, %v443
        %v476 = vmax.f32 %v412, %v444
        %v477 = vmax.f32 %v413, %v445
        %v478 = vmax.f32 %v414, %v446
        %v479 = vmax.f32 %v415, %v447
        %v480 = vmax.f32 %v416, %v448
        %v481 = vmax.f32 %v417, %v449
        %v482 = vmax.f32 %v418, %v450
        %v483 = vmax.f32 %v419, %v451
        %v484 = vmax.f32 %v420, %v452
        %v485 = vmax.f32 %v421, %v453
        %v486 = vmax.f32 %v422, %v454
        %v487 = vmax.f32 %v423, %v455
        %v488 = vmax.f32 %v424, %v456
        %v489 = vld [vmem:[%s249] sm:$0xff]
        %v490 = vld [vmem:[%s249 + $0x8] sm:$0xff]
        %v491 = vld [vmem:[%s249 + $0x10] sm:$0xff]
        %v492 = vld [vmem:[%s249 + $0x18] sm:$0xff]
        %v493 = vld [vmem:[%s249 + $0x20] sm:$0xff]
        %v494 = vld [vmem:[%s249 + $0x28] sm:$0xff]
        %v495 = vld [vmem:[%s249 + $0x30] sm:$0xff]
        %v496 = vld [vmem:[%s249 + $0x38] sm:$0xff]
        %vm497 = vnez %v489
        %vm498 = vnez %v490
        %vm499 = vnez %v491
        %vm500 = vnez %v492
        %vm501 = vnez %v493
        %vm502 = vnez %v494
        %vm503 = vnez %v495
        %vm504 = vnez %v496
        %v505 = vsel %vm497, 16843009, 0
        %v506 = vsel %vm498, 16843009, 0
        %v507 = vsel %vm499, 16843009, 0
        %v508 = vsel %vm500, 16843009, 0
        %v509 = vsel %vm501, 16843009, 0
        %v510 = vsel %vm502, 16843009, 0
        %v511 = vsel %vm503, 16843009, 0
        %v512 = vsel %vm504, 16843009, 0
        %v513 = vunpack.c.0.s8 %v505
        %v514 = vunpack.c.0.s8 %v506
        %v515 = vunpack.c.1.s8 %v505
        %v516 = vunpack.c.1.s8 %v506
        %v517 = vunpack.c.2.s8 %v505
        %v518 = vunpack.c.2.s8 %v506
        %v519 = vunpack.c.3.s8 %v505
        %v520 = vunpack.c.3.s8 %v506
        %v521 = vunpack.c.0.s8 %v507
        %v522 = vunpack.c.0.s8 %v508
        %v523 = vunpack.c.1.s8 %v507
        %v524 = vunpack.c.1.s8 %v508
        %v525 = vunpack.c.2.s8 %v507
        %v526 = vunpack.c.2.s8 %v508
        %v527 = vunpack.c.3.s8 %v507
        %v528 = vunpack.c.3.s8 %v508
        %v529 = vunpack.c.0.s8 %v509
        %v530 = vunpack.c.0.s8 %v510
        %v531 = vunpack.c.1.s8 %v509
        %v532 = vunpack.c.1.s8 %v510
        %v533 = vunpack.c.2.s8 %v509
        %v534 = vunpack.c.2.s8 %v510
        %v535 = vunpack.c.3.s8 %v509
        %v536 = vunpack.c.3.s8 %v510
        %v537 = vunpack.c.0.s8 %v511
        %v538 = vunpack.c.0.s8 %v512
        %v539 = vunpack.c.1.s8 %v511
        %v540 = vunpack.c.1.s8 %v512
        %v541 = vunpack.c.2.s8 %v511
        %v542 = vunpack.c.2.s8 %v512
        %v543 = vunpack.c.3.s8 %v511
        %v544 = vunpack.c.3.s8 %v512
        %v545 = vpack.c.b16 %v514, %v513
        %v546 = vpack.c.b8 %v545, %v545
        %v547 = vpack.c.b16 %v516, %v515
        %v548 = vpack.c.b8 %v547, %v547
        %v549 = vpack.c.b16 %v518, %v517
        %v550 = vpack.c.b8 %v549, %v549
        %v551 = vpack.c.b16 %v520, %v519
        %v552 = vpack.c.b8 %v551, %v551
        %v553 = vpack.c.b16 %v522, %v521
        %v554 = vpack.c.b8 %v553, %v553
        %v555 = vpack.c.b16 %v524, %v523
        %v556 = vpack.c.b8 %v555, %v555
        %v557 = vpack.c.b16 %v526, %v525
        %v558 = vpack.c.b8 %v557, %v557
        %v559 = vpack.c.b16 %v528, %v527
        %v560 = vpack.c.b8 %v559, %v559
        %v561 = vpack.c.b16 %v530, %v529
        %v562 = vpack.c.b8 %v561, %v561
        %v563 = vpack.c.b16 %v532, %v531
        %v564 = vpack.c.b8 %v563, %v563
        %v565 = vpack.c.b16 %v534, %v533
        %v566 = vpack.c.b8 %v565, %v565
        %v567 = vpack.c.b16 %v536, %v535
        %v568 = vpack.c.b8 %v567, %v567
        %v569 = vpack.c.b16 %v538, %v537
        %v570 = vpack.c.b8 %v569, %v569
        %v571 = vpack.c.b16 %v540, %v539
        %v572 = vpack.c.b8 %v571, %v571
        %v573 = vpack.c.b16 %v542, %v541
        %v574 = vpack.c.b8 %v573, %v573
        %v575 = vpack.c.b16 %v544, %v543
        %v576 = vpack.c.b8 %v575, %v575
        %vm577 = vnez %v546
        %vm578 = vnez %v548
        %vm579 = vnez %v550
        %vm580 = vnez %v552
        %vm581 = vnez %v554
        %vm582 = vnez %v556
        %vm583 = vnez %v558
        %vm584 = vnez %v560
        %vm585 = vnez %v562
        %vm586 = vnez %v564
        %vm587 = vnez %v566
        %vm588 = vnez %v568
        %vm589 = vnez %v570
        %vm590 = vnez %v572
        %vm591 = vnez %v574
        %vm592 = vnez %v576
        %v593 = vsel %vm577, 16843009, 0
        %v594 = vsel %vm578, 16843009, 0
        %v595 = vsel %vm579, 16843009, 0
        %v596 = vsel %vm580, 16843009, 0
        %v597 = vsel %vm581, 16843009, 0
        %v598 = vsel %vm582, 16843009, 0
        %v599 = vsel %vm583, 16843009, 0
        %v600 = vsel %vm584, 16843009, 0
        %v601 = vsel %vm585, 16843009, 0
        %v602 = vsel %vm586, 16843009, 0
        %v603 = vsel %vm587, 16843009, 0
        %v604 = vsel %vm588, 16843009, 0
        %v605 = vsel %vm589, 16843009, 0
        %v606 = vsel %vm590, 16843009, 0
        %v607 = vsel %vm591, 16843009, 0
        %v608 = vsel %vm592, 16843009, 0
        %v609 = vunpack.c.0.s8 %v593
        %v610 = vunpack.c.1.s8 %v593
        %v611 = vunpack.c.0.s8 %v594
        %v612 = vunpack.c.1.s8 %v594
        %v613 = vunpack.c.0.s8 %v595
        %v614 = vunpack.c.1.s8 %v595
        %v615 = vunpack.c.0.s8 %v596
        %v616 = vunpack.c.1.s8 %v596
        %v617 = vunpack.c.0.s8 %v597
        %v618 = vunpack.c.1.s8 %v597
        %v619 = vunpack.c.0.s8 %v598
        %v620 = vunpack.c.1.s8 %v598
        %v621 = vunpack.c.0.s8 %v599
        %v622 = vunpack.c.1.s8 %v599
        %v623 = vunpack.c.0.s8 %v600
        %v624 = vunpack.c.1.s8 %v600
        %v625 = vunpack.c.0.s8 %v601
        %v626 = vunpack.c.1.s8 %v601
        %v627 = vunpack.c.0.s8 %v602
        %v628 = vunpack.c.1.s8 %v602
        %v629 = vunpack.c.0.s8 %v603
        %v630 = vunpack.c.1.s8 %v603
        %v631 = vunpack.c.0.s8 %v604
        %v632 = vunpack.c.1.s8 %v604
        %v633 = vunpack.c.0.s8 %v605
        %v634 = vunpack.c.1.s8 %v605
        %v635 = vunpack.c.0.s8 %v606
        %v636 = vunpack.c.1.s8 %v606
        %v637 = vunpack.c.0.s8 %v607
        %v638 = vunpack.c.1.s8 %v607
        %v639 = vunpack.c.0.s8 %v608
        %v640 = vunpack.c.1.s8 %v608
        %vm641 = vcmp.ne.s32.totalorder %v609, 0
        %vm642 = vcmp.ne.s32.totalorder %v610, 0
        %vm643 = vcmp.ne.s32.totalorder %v611, 0
        %vm644 = vcmp.ne.s32.totalorder %v612, 0
        %vm645 = vcmp.ne.s32.totalorder %v613, 0
        %vm646 = vcmp.ne.s32.totalorder %v614, 0
        %vm647 = vcmp.ne.s32.totalorder %v615, 0
        %vm648 = vcmp.ne.s32.totalorder %v616, 0
        %vm649 = vcmp.ne.s32.totalorder %v617, 0
        %vm650 = vcmp.ne.s32.totalorder %v618, 0
        %vm651 = vcmp.ne.s32.totalorder %v619, 0
        %vm652 = vcmp.ne.s32.totalorder %v620, 0
        %vm653 = vcmp.ne.s32.totalorder %v621, 0
        %vm654 = vcmp.ne.s32.totalorder %v622, 0
        %vm655 = vcmp.ne.s32.totalorder %v623, 0
        %vm656 = vcmp.ne.s32.totalorder %v624, 0
        %vm657 = vcmp.ne.s32.totalorder %v625, 0
        %vm658 = vcmp.ne.s32.totalorder %v626, 0
        %vm659 = vcmp.ne.s32.totalorder %v627, 0
        %vm660 = vcmp.ne.s32.totalorder %v628, 0
        %vm661 = vcmp.ne.s32.totalorder %v629, 0
        %vm662 = vcmp.ne.s32.totalorder %v630, 0
        %vm663 = vcmp.ne.s32.totalorder %v631, 0
        %vm664 = vcmp.ne.s32.totalorder %v632, 0
        %vm665 = vcmp.ne.s32.totalorder %v633, 0
        %vm666 = vcmp.ne.s32.totalorder %v634, 0
        %vm667 = vcmp.ne.s32.totalorder %v635, 0
        %vm668 = vcmp.ne.s32.totalorder %v636, 0
        %vm669 = vcmp.ne.s32.totalorder %v637, 0
        %vm670 = vcmp.ne.s32.totalorder %v638, 0
        %vm671 = vcmp.ne.s32.totalorder %v639, 0
        %vm672 = vcmp.ne.s32.totalorder %v640, 0
        %v673 = vsel %vm641, %v457, -1e+30
        %v674 = vsel %vm642, %v458, -1e+30
        %v675 = vsel %vm643, %v459, -1e+30
        %v676 = vsel %vm644, %v460, -1e+30
        %v677 = vsel %vm645, %v461, -1e+30
        %v678 = vsel %vm646, %v462, -1e+30
        %v679 = vsel %vm647, %v463, -1e+30
        %v680 = vsel %vm648, %v464, -1e+30
        %v681 = vsel %vm649, %v465, -1e+30
        %v682 = vsel %vm650, %v466, -1e+30
        %v683 = vsel %vm651, %v467, -1e+30
        %v684 = vsel %vm652, %v468, -1e+30
        %v685 = vsel %vm653, %v469, -1e+30
        %v686 = vsel %vm654, %v470, -1e+30
        %v687 = vsel %vm655, %v471, -1e+30
        %v688 = vsel %vm656, %v472, -1e+30
        %v689 = vsel %vm657, %v473, -1e+30
        %v690 = vsel %vm658, %v474, -1e+30
        %v691 = vsel %vm659, %v475, -1e+30
        %v692 = vsel %vm660, %v476, -1e+30
        %v693 = vsel %vm661, %v477, -1e+30
        %v694 = vsel %vm662, %v478, -1e+30
        %v695 = vsel %vm663, %v479, -1e+30
        %v696 = vsel %vm664, %v480, -1e+30
        %v697 = vsel %vm665, %v481, -1e+30
        %v698 = vsel %vm666, %v482, -1e+30
        %v699 = vsel %vm667, %v483, -1e+30
        %v700 = vsel %vm668, %v484, -1e+30
        %v701 = vsel %vm669, %v485, -1e+30
        %v702 = vsel %vm670, %v486, -1e+30
        %v703 = vsel %vm671, %v487, -1e+30
        %v704 = vsel %vm672, %v488, -1e+30
        %v705 = vmax.f32 %v673, %v674
        %706 = vmax.xlane.f32.xlu0 %v705
        %v707 = vpop.xlane.xlu0 %706
        %v708 = vmax.f32 %v675, %v676
        %709 = vmax.xlane.f32.xlu0 %v708
        %v710 = vpop.xlane.xlu0 %709
        %v711 = vmax.f32 %v677, %v678
        %712 = vmax.xlane.f32.xlu0 %v711
        %v713 = vpop.xlane.xlu0 %712
        %v714 = vmax.f32 %v679, %v680
        %715 = vmax.xlane.f32.xlu0 %v714
        %v716 = vpop.xlane.xlu0 %715
        %v717 = vmax.f32 %v681, %v682
        %718 = vmax.xlane.f32.xlu0 %v717
        %v719 = vpop.xlane.xlu0 %718
        %v720 = vmax.f32 %v683, %v684
        %721 = vmax.xlane.f32.xlu0 %v720
        %v722 = vpop.xlane.xlu0 %721
        %v723 = vmax.f32 %v685, %v686
        %724 = vmax.xlane.f32.xlu0 %v723
        %v725 = vpop.xlane.xlu0 %724
        %v726 = vmax.f32 %v687, %v688
        %727 = vmax.xlane.f32.xlu0 %v726
        %v728 = vpop.xlane.xlu0 %727
        %v729 = vmax.f32 %v689, %v690
        %730 = vmax.xlane.f32.xlu0 %v729
        %v731 = vpop.xlane.xlu0 %730
        %v732 = vmax.f32 %v691, %v692
        %733 = vmax.xlane.f32.xlu0 %v732
        %v734 = vpop.xlane.xlu0 %733
        %v735 = vmax.f32 %v693, %v694
        %736 = vmax.xlane.f32.xlu0 %v735
        %v737 = vpop.xlane.xlu0 %736
        %v738 = vmax.f32 %v695, %v696
        %739 = vmax.xlane.f32.xlu0 %v738
        %v740 = vpop.xlane.xlu0 %739
        %v741 = vmax.f32 %v697, %v698
        %742 = vmax.xlane.f32.xlu0 %v741
        %v743 = vpop.xlane.xlu0 %742
        %v744 = vmax.f32 %v699, %v700
        %745 = vmax.xlane.f32.xlu0 %v744
        %v746 = vpop.xlane.xlu0 %745
        %v747 = vmax.f32 %v701, %v702
        %748 = vmax.xlane.f32.xlu0 %v747
        %v749 = vpop.xlane.xlu0 %748
        %v750 = vmax.f32 %v703, %v704
        %751 = vmax.xlane.f32.xlu0 %v750
        %v752 = vpop.xlane.xlu0 %751
        %v753 = vsub.f32 %v673, %v707
        %v754 = vsub.f32 %v674, %v707
        %v755 = vsub.f32 %v675, %v710
        %v756 = vsub.f32 %v676, %v710
        %v757 = vsub.f32 %v677, %v713
        %v758 = vsub.f32 %v678, %v713
        %v759 = vsub.f32 %v679, %v716
        %v760 = vsub.f32 %v680, %v716
        %v761 = vsub.f32 %v681, %v719
        %v762 = vsub.f32 %v682, %v719
        %v763 = vsub.f32 %v683, %v722
        %v764 = vsub.f32 %v684, %v722
        %v765 = vsub.f32 %v685, %v725
        %v766 = vsub.f32 %v686, %v725
        %v767 = vsub.f32 %v687, %v728
        %v768 = vsub.f32 %v688, %v728
        %v769 = vsub.f32 %v689, %v731
        %v770 = vsub.f32 %v690, %v731
        %v771 = vsub.f32 %v691, %v734
        %v772 = vsub.f32 %v692, %v734
        %v773 = vsub.f32 %v693, %v737
        %v774 = vsub.f32 %v694, %v737
        %v775 = vsub.f32 %v695, %v740
        %v776 = vsub.f32 %v696, %v740
        %v777 = vsub.f32 %v697, %v743
        %v778 = vsub.f32 %v698, %v743
        %v779 = vsub.f32 %v699, %v746
        %v780 = vsub.f32 %v700, %v746
        %v781 = vsub.f32 %v701, %v749
        %v782 = vsub.f32 %v702, %v749
        %v783 = vsub.f32 %v703, %v752
        %v784 = vsub.f32 %v704, %v752
        %v785 = vpack.c.bf16 %v755, %v753
        %v786 = vpack.c.bf16 %v756, %v754
        %v787 = vpack.c.bf16 %v759, %v757
        %v788 = vpack.c.bf16 %v760, %v758
        %v789 = vpack.c.bf16 %v763, %v761
        %v790 = vpack.c.bf16 %v764, %v762
        %v791 = vpack.c.bf16 %v767, %v765
        %v792 = vpack.c.bf16 %v768, %v766
        %v793 = vpack.c.bf16 %v771, %v769
        %v794 = vpack.c.bf16 %v772, %v770
        %v795 = vpack.c.bf16 %v775, %v773
        %v796 = vpack.c.bf16 %v776, %v774
        %v797 = vpack.c.bf16 %v779, %v777
        %v798 = vpack.c.bf16 %v780, %v778
        %v799 = vpack.c.bf16 %v783, %v781
        %v800 = vpack.c.bf16 %v784, %v782
        %v802 = vmul.bf16 %v785, 1069105081
        %v803 = vpow.bf16.pop %v802
        %v805 = vmul.bf16 %v786, 1069105081
        %v806 = vpow.bf16.pop %v805
        %v808 = vmul.bf16 %v787, 1069105081
        %v809 = vpow.bf16.pop %v808
        %v811 = vmul.bf16 %v788, 1069105081
        %v812 = vpow.bf16.pop %v811
        %v814 = vmul.bf16 %v789, 1069105081
        %v815 = vpow.bf16.pop %v814
        %v817 = vmul.bf16 %v790, 1069105081
        %v818 = vpow.bf16.pop %v817
        %v820 = vmul.bf16 %v791, 1069105081
        %v821 = vpow.bf16.pop %v820
        %v823 = vmul.bf16 %v792, 1069105081
        %v824 = vpow.bf16.pop %v823
        %v826 = vmul.bf16 %v793, 1069105081
        %v827 = vpow.bf16.pop %v826
        %v829 = vmul.bf16 %v794, 1069105081
        %v830 = vpow.bf16.pop %v829
        %v832 = vmul.bf16 %v795, 1069105081
        %v833 = vpow.bf16.pop %v832
        %v835 = vmul.bf16 %v796, 1069105081
        %v836 = vpow.bf16.pop %v835
        %v838 = vmul.bf16 %v797, 1069105081
        %v839 = vpow.bf16.pop %v838
        %v841 = vmul.bf16 %v798, 1069105081
        %v842 = vpow.bf16.pop %v841
        %v844 = vmul.bf16 %v799, 1069105081
        %v845 = vpow.bf16.pop %v844
        %v847 = vmul.bf16 %v800, 1069105081
        %v848 = vpow.bf16.pop %v847
        %v849 = vunpack.c.l.bf16 %v803
        %v850 = vunpack.c.l.bf16 %v806
        %v851 = vunpack.c.h.bf16 %v803
        %v852 = vunpack.c.h.bf16 %v806
        %v853 = vunpack.c.l.bf16 %v809
        %v854 = vunpack.c.l.bf16 %v812
        %v855 = vunpack.c.h.bf16 %v809
        %v856 = vunpack.c.h.bf16 %v812
        %v857 = vunpack.c.l.bf16 %v815
        %v858 = vunpack.c.l.bf16 %v818
        %v859 = vunpack.c.h.bf16 %v815
        %v860 = vunpack.c.h.bf16 %v818
        %v861 = vunpack.c.l.bf16 %v821
        %v862 = vunpack.c.l.bf16 %v824
        %v863 = vunpack.c.h.bf16 %v821
        %v864 = vunpack.c.h.bf16 %v824
        %v865 = vunpack.c.l.bf16 %v827
        %v866 = vunpack.c.l.bf16 %v830
        %v867 = vunpack.c.h.bf16 %v827
        %v868 = vunpack.c.h.bf16 %v830
        %v869 = vunpack.c.l.bf16 %v833
        %v870 = vunpack.c.l.bf16 %v836
        %v871 = vunpack.c.h.bf16 %v833
        %v872 = vunpack.c.h.bf16 %v836
        %v873 = vunpack.c.l.bf16 %v839
        %v874 = vunpack.c.l.bf16 %v842
        %v875 = vunpack.c.h.bf16 %v839
        %v876 = vunpack.c.h.bf16 %v842
        %v877 = vunpack.c.l.bf16 %v845
        %v878 = vunpack.c.l.bf16 %v848
        %v879 = vunpack.c.h.bf16 %v845
        %v880 = vunpack.c.h.bf16 %v848
        %v881 = vadd.f32 %v849, %v850
        %882 = vadd.xlane.f32.xlu0 %v881
        %v883 = vpop.xlane.xlu0 %882
        %v884 = vadd.f32 %v851, %v852
        %885 = vadd.xlane.f32.xlu0 %v884
        %v886 = vpop.xlane.xlu0 %885
        %v887 = vadd.f32 %v853, %v854
        %888 = vadd.xlane.f32.xlu0 %v887
        %v889 = vpop.xlane.xlu0 %888
        %v890 = vadd.f32 %v855, %v856
        %891 = vadd.xlane.f32.xlu0 %v890
        %v892 = vpop.xlane.xlu0 %891
        %v893 = vadd.f32 %v857, %v858
        %894 = vadd.xlane.f32.xlu0 %v893
        %v895 = vpop.xlane.xlu0 %894
        %v896 = vadd.f32 %v859, %v860
        %897 = vadd.xlane.f32.xlu0 %v896
        %v898 = vpop.xlane.xlu0 %897
        %v899 = vadd.f32 %v861, %v862
        %900 = vadd.xlane.f32.xlu0 %v899
        %v901 = vpop.xlane.xlu0 %900
        %v902 = vadd.f32 %v863, %v864
        %903 = vadd.xlane.f32.xlu0 %v902
        %v904 = vpop.xlane.xlu0 %903
        %v905 = vadd.f32 %v865, %v866
        %906 = vadd.xlane.f32.xlu0 %v905
        %v907 = vpop.xlane.xlu0 %906
        %v908 = vadd.f32 %v867, %v868
        %909 = vadd.xlane.f32.xlu0 %v908
        %v910 = vpop.xlane.xlu0 %909
        %v911 = vadd.f32 %v869, %v870
        %912 = vadd.xlane.f32.xlu0 %v911
        %v913 = vpop.xlane.xlu0 %912
        %v914 = vadd.f32 %v871, %v872
        %915 = vadd.xlane.f32.xlu0 %v914
        %v916 = vpop.xlane.xlu0 %915
        %v917 = vadd.f32 %v873, %v874
        %918 = vadd.xlane.f32.xlu0 %v917
        %v919 = vpop.xlane.xlu0 %918
        %v920 = vadd.f32 %v875, %v876
        %921 = vadd.xlane.f32.xlu0 %v920
        %v922 = vpop.xlane.xlu0 %921
        %v923 = vadd.f32 %v877, %v878
        %924 = vadd.xlane.f32.xlu0 %v923
        %v925 = vpop.xlane.xlu0 %924
        %v926 = vadd.f32 %v879, %v880
        %927 = vadd.xlane.f32.xlu0 %v926
        %v928 = vpop.xlane.xlu0 %927
        %v929 = vld [vmem:[#allocation2] sm:$0xf]
        %v930 = vld [vmem:[#allocation2 + $0x4] sm:$0xf]
        %v931 = vld [vmem:[#allocation2 + $0x8] sm:$0xf]
        %v932 = vld [vmem:[#allocation2 + $0xc] sm:$0xf]
        %v933 = vld [vmem:[#allocation2 + $0x10] sm:$0xf]
        %v934 = vld [vmem:[#allocation2 + $0x14] sm:$0xf]
        %v935 = vld [vmem:[#allocation2 + $0x18] sm:$0xf]
        %v936 = vld [vmem:[#allocation2 + $0x1c] sm:$0xf]
        %v937 = vld [vmem:[#allocation2 + $0x20] sm:$0xf]
        %v938 = vld [vmem:[#allocation2 + $0x24] sm:$0xf]
        %v939 = vld [vmem:[#allocation2 + $0x28] sm:$0xf]
        %v940 = vld [vmem:[#allocation2 + $0x2c] sm:$0xf]
        %v941 = vld [vmem:[#allocation2 + $0x30] sm:$0xf]
        %v942 = vld [vmem:[#allocation2 + $0x34] sm:$0xf]
        %v943 = vld [vmem:[#allocation2 + $0x38] sm:$0xf]
        %v944 = vld [vmem:[#allocation2 + $0x3c] sm:$0xf]
        %v945 = vld [vmem:[#allocation2 + $0x40] sm:$0xf]
        %v946 = vld [vmem:[#allocation2 + $0x44] sm:$0xf]
        %v947 = vld [vmem:[#allocation2 + $0x48] sm:$0xf]
        %v948 = vld [vmem:[#allocation2 + $0x4c] sm:$0xf]
        %v949 = vld [vmem:[#allocation2 + $0x50] sm:$0xf]
        %v950 = vld [vmem:[#allocation2 + $0x54] sm:$0xf]
        %v951 = vld [vmem:[#allocation2 + $0x58] sm:$0xf]
        %v952 = vld [vmem:[#allocation2 + $0x5c] sm:$0xf]
        %v953 = vld [vmem:[#allocation2 + $0x60] sm:$0xf]
        %v954 = vld [vmem:[#allocation2 + $0x64] sm:$0xf]
        %v955 = vld [vmem:[#allocation2 + $0x68] sm:$0xf]
        %v956 = vld [vmem:[#allocation2 + $0x6c] sm:$0xf]
        %v957 = vld [vmem:[#allocation2 + $0x70] sm:$0xf]
        %v958 = vld [vmem:[#allocation2 + $0x74] sm:$0xf]
        %v959 = vld [vmem:[#allocation2 + $0x78] sm:$0xf]
        %v960 = vld [vmem:[#allocation2 + $0x7c] sm:$0xf]
        %v993 = vunpack.c.l.b16 %v929
        %v994 = vunpack.c.l.b16 %v930
        %v995 = vunpack.c.l.b16 %v931
        %v996 = vunpack.c.l.b16 %v932
        %v997 = vunpack.c.l.b16 %v933
        %v998 = vunpack.c.l.b16 %v934
        %v999 = vunpack.c.l.b16 %v935
        %v1000 = vunpack.c.l.b16 %v936
        %v1001 = vunpack.c.l.b16 %v937
        %v1002 = vunpack.c.l.b16 %v938
        %v1003 = vunpack.c.l.b16 %v939
        %v1004 = vunpack.c.l.b16 %v940
        %v1005 = vunpack.c.l.b16 %v941
        %v1006 = vunpack.c.l.b16 %v942
        %v1007 = vunpack.c.l.b16 %v943
        %v1008 = vunpack.c.l.b16 %v944
        %v1009 = vunpack.c.l.b16 %v945
        %v1010 = vunpack.c.l.b16 %v946
        %v1011 = vunpack.c.l.b16 %v947
        %v1012 = vunpack.c.l.b16 %v948
        %v1013 = vunpack.c.l.b16 %v949
        %v1014 = vunpack.c.l.b16 %v950
        %v1015 = vunpack.c.l.b16 %v951
        %v1016 = vunpack.c.l.b16 %v952
        %v1017 = vunpack.c.l.b16 %v953
        %v1018 = vunpack.c.l.b16 %v954
        %v1019 = vunpack.c.l.b16 %v955
        %v1020 = vunpack.c.l.b16 %v956
        %v1021 = vunpack.c.l.b16 %v957
        %v1022 = vunpack.c.l.b16 %v958
        %v1023 = vunpack.c.l.b16 %v959
        %v1024 = vunpack.c.l.b16 %v960
        %v1025 = vpack.c.b16 %v994, %v993
        %v1026 = vpack.c.b16 %v996, %v995
        %v1027 = vpack.c.b16 %v998, %v997
        %v1028 = vpack.c.b16 %v1000, %v999
        %v1029 = vpack.c.b16 %v1002, %v1001
        %v1030 = vpack.c.b16 %v1004, %v1003
        %v1031 = vpack.c.b16 %v1006, %v1005
        %v1032 = vpack.c.b16 %v1008, %v1007
        %v1033 = vpack.c.b16 %v1010, %v1009
        %v1034 = vpack.c.b16 %v1012, %v1011
        %v1035 = vpack.c.b16 %v1014, %v1013
        %v1036 = vpack.c.b16 %v1016, %v1015
        %v1037 = vpack.c.b16 %v1018, %v1017
        %v1038 = vpack.c.b16 %v1020, %v1019
        %v1039 = vpack.c.b16 %v1022, %v1021
        %v1040 = vpack.c.b16 %v1024, %v1023
        %1057 = vmatprep.subr.bf16.mxu0 0
        %1058 = vmatpush1.bf16.msra.mxu0 %v1025
        %1059 = vmatprep.subr.bf16.mxu0 0
        %1060 = vmatpush1.bf16.msra.mxu0 %v1026
        %1061 = vmatprep.subr.bf16.mxu0 0
        %1062 = vmatpush1.bf16.msra.mxu0 %v1027
        %1063 = vmatprep.subr.bf16.mxu0 0
        %1064 = vmatpush1.bf16.msra.mxu0 %v1028
        %1065 = vmatprep.subr.bf16.mxu0 0
        %1066 = vmatpush1.bf16.msra.mxu0 %v1029
        %1067 = vmatprep.subr.bf16.mxu0 0
        %1068 = vmatpush1.bf16.msra.mxu0 %v1030
        %1069 = vmatprep.subr.bf16.mxu0 0
        %1070 = vmatpush1.bf16.msra.mxu0 %v1031
        %1071 = vmatprep.subr.bf16.mxu0 0
        %1072 = vmatpush1.bf16.msra.mxu0 %v1032
        %1073 = vmatprep.subr.bf16.mxu0 0
        %1074 = vmatpush1.bf16.msra.mxu0 %v1033
        %1075 = vmatprep.subr.bf16.mxu0 0
        %1076 = vmatpush1.bf16.msra.mxu0 %v1034
        %1077 = vmatprep.subr.bf16.mxu0 0
        %1078 = vmatpush1.bf16.msra.mxu0 %v1035
        %1079 = vmatprep.subr.bf16.mxu0 0
        %1080 = vmatpush1.bf16.msra.mxu0 %v1036
        %1081 = vmatprep.subr.bf16.mxu0 0
        %1082 = vmatpush1.bf16.msra.mxu0 %v1037
        %1083 = vmatprep.subr.bf16.mxu0 0
        %1084 = vmatpush1.bf16.msra.mxu0 %v1038
        %1085 = vmatprep.subr.bf16.mxu0 0
        %1086 = vmatpush1.bf16.msra.mxu0 %v1039
        %1087 = vmatprep.subr.bf16.mxu0 0
        %1088 = vmatpush1.bf16.msra.mxu0 %v1040
        %1089 = vmatprep.mubr.bf16.mxu0 %v806
        %1090 = vmatmul.mubr.bf16.gmra.mrb[0].mxu0 %v803
        %v1091 = vpop.f32.mrb[0].mxu0
        %v1092 = vadd.f32 0.0, %v1091
        %v1093 = vpop.f32.mrb[0].mxu0
        %v1094 = vpop.f32.mrb[0].mxu0
        %v1095 = vadd.f32 0.0, %v1094
        %v1096 = vpop.f32.mrb[0].mxu0
        %1097 = vmatprep.mubr.bf16.mxu0 %v812
        %1098 = vmatmul.mubr.bf16.gmra.mrb[0].mxu0 %v809
        %v1099 = vpop.f32.mrb[0].mxu0
        %v1100 = vadd.f32 0.0, %v1099
        %v1101 = vpop.f32.mrb[0].mxu0
        %v1102 = vpop.f32.mrb[0].mxu0
        %v1103 = vadd.f32 0.0, %v1102
        %v1104 = vpop.f32.mrb[0].mxu0
        %1105 = vmatprep.mubr.bf16.mxu0 %v818
        %1106 = vmatmul.mubr.bf16.gmra.mrb[0].mxu0 %v815
        %v1107 = vpop.f32.mrb[0].mxu0
        %v1108 = vadd.f32 0.0, %v1107
        %v1109 = vpop.f32.mrb[0].mxu0
        %v1110 = vpop.f32.mrb[0].mxu0
        %v1111 = vadd.f32 0.0, %v1110
        %v1112 = vpop.f32.mrb[0].mxu0
        %1113 = vmatprep.mubr.bf16.mxu0 %v824
        %1114 = vmatmul.mubr.bf16.gmra.mrb[0].mxu0 %v821
        %v1115 = vpop.f32.mrb[0].mxu0
        %v1116 = vadd.f32 0.0, %v1115
        %v1117 = vpop.f32.mrb[0].mxu0
        %v1118 = vpop.f32.mrb[0].mxu0
        %v1119 = vadd.f32 0.0, %v1118
        %v1120 = vpop.f32.mrb[0].mxu0
        %1121 = vmatprep.mubr.bf16.mxu0 %v830
        %1122 = vmatmul.mubr.bf16.gmra.mrb[0].mxu0 %v827
        %v1123 = vpop.f32.mrb[0].mxu0
        %v1124 = vadd.f32 0.0, %v1123
        %v1125 = vpop.f32.mrb[0].mxu0
        %v1126 = vpop.f32.mrb[0].mxu0
        %v1127 = vadd.f32 0.0, %v1126
        %v1128 = vpop.f32.mrb[0].mxu0
        %1129 = vmatprep.mubr.bf16.mxu0 %v836
        %1130 = vmatmul.mubr.bf16.gmra.mrb[0].mxu0 %v833
        %v1131 = vpop.f32.mrb[0].mxu0
        %v1132 = vadd.f32 0.0, %v1131
        %v1133 = vpop.f32.mrb[0].mxu0
        %v1134 = vpop.f32.mrb[0].mxu0
        %v1135 = vadd.f32 0.0, %v1134
        %v1136 = vpop.f32.mrb[0].mxu0
        %1137 = vmatprep.mubr.bf16.mxu0 %v842
        %1138 = vmatmul.mubr.bf16.gmra.mrb[0].mxu0 %v839
        %v1139 = vpop.f32.mrb[0].mxu0
        %v1140 = vadd.f32 0.0, %v1139
        %v1141 = vpop.f32.mrb[0].mxu0
        %v1142 = vpop.f32.mrb[0].mxu0
        %v1143 = vadd.f32 0.0, %v1142
        %v1144 = vpop.f32.mrb[0].mxu0
        %1145 = vmatprep.mubr.bf16.mxu0 %v848
        %1146 = vmatmul.mubr.bf16.gmra.mrb[0].mxu0 %v845
        %v1147 = vpop.f32.mrb[0].mxu0
        %v1148 = vadd.f32 0.0, %v1147
        %v1149 = vpop.f32.mrb[0].mxu0
        %v1150 = vpop.f32.mrb[0].mxu0
        %v1151 = vadd.f32 0.0, %v1150
        %v1152 = vpop.f32.mrb[0].mxu0
        %1153 = vdwg.mxu0
        %v1154 = vrcp.pop %v883
        %v1155 = vrcp.pop %v886
        %v1156 = vrcp.pop %v889
        %v1157 = vrcp.pop %v892
        %v1158 = vrcp.pop %v895
        %v1159 = vrcp.pop %v898
        %v1160 = vrcp.pop %v901
        %v1161 = vrcp.pop %v904
        %v1162 = vrcp.pop %v907
        %v1163 = vrcp.pop %v910
        %v1164 = vrcp.pop %v913
        %v1165 = vrcp.pop %v916
        %v1166 = vrcp.pop %v919
        %v1167 = vrcp.pop %v922
        %v1168 = vrcp.pop %v925
        %v1169 = vrcp.pop %v928
        %v1170 = vmul.f32 %v1092, %v1154
        %v1171 = vmul.f32 %v1095, %v1155
        %v1172 = vmul.f32 %v1100, %v1156
        %v1173 = vmul.f32 %v1103, %v1157
        %v1174 = vmul.f32 %v1108, %v1158
        %v1175 = vmul.f32 %v1111, %v1159
        %v1176 = vmul.f32 %v1116, %v1160
        %v1177 = vmul.f32 %v1119, %v1161
        %v1178 = vmul.f32 %v1124, %v1162
        %v1179 = vmul.f32 %v1127, %v1163
        %v1180 = vmul.f32 %v1132, %v1164
        %v1181 = vmul.f32 %v1135, %v1165
        %v1182 = vmul.f32 %v1140, %v1166
        %v1183 = vmul.f32 %v1143, %v1167
        %v1184 = vmul.f32 %v1148, %v1168
        %v1185 = vmul.f32 %v1151, %v1169
        %1186 = vst [vmem:[%s278] sm:$0xff] %v1170
        %1187 = vst [vmem:[%s278 + $0x8] sm:$0xff] %v1171
        %1188 = vst [vmem:[%s278 + $0x10] sm:$0xff] %v1172
        %1189 = vst [vmem:[%s278 + $0x18] sm:$0xff] %v1173
        %1190 = vst [vmem:[%s278 + $0x20] sm:$0xff] %v1174
        %1191 = vst [vmem:[%s278 + $0x28] sm:$0xff] %v1175
        %1192 = vst [vmem:[%s278 + $0x30] sm:$0xff] %v1176
        %1193 = vst [vmem:[%s278 + $0x38] sm:$0xff] %v1177
        %1194 = vst [vmem:[%s278 + $0x40] sm:$0xff] %v1178
        %1195 = vst [vmem:[%s278 + $0x48] sm:$0xff] %v1179
        %1196 = vst [vmem:[%s278 + $0x50] sm:$0xff] %v1180
        %1197 = vst [vmem:[%s278 + $0x58] sm:$0xff] %v1181
        %1198 = vst [vmem:[%s278 + $0x60] sm:$0xff] %v1182
        %1199 = vst [vmem:[%s278 + $0x68] sm:$0xff] %v1183
        %1200 = vst [vmem:[%s278 + $0x70] sm:$0xff] %v1184
        %1201 = vst [vmem:[%s278 + $0x78] sm:$0xff] %v1185
        %s1202 = sand.u32 %s122, 1
        %s1203 = scalar_lea.sflag [#allocation4], %s1202
        %s1204 = sand.u32 %s122, 1
        %s1205 = smul.addr %s1204, 128
        %s1206 = scalar_lea.vmem [#allocation9], %s1205
        // Predicated region
        $region53: #{gat_layer.3} parent=35 // pred_check
          %p1207 = pneg %p132
        $region54: #{gat_layer.3} parent=35 // pred_check_branch
          %1209 = sbr.rel (%p1207) target = $region56
        $region55: #{gat_layer.3} parent=35 // pred_region
          %s1210 = smul.u32 16, %s20
          %s1212 = ssub.s32 2048, 2048
          %1213 = vsyncadd %s1203, %s1212
          %s1214 = smul.addr %s1210, 128
          %s1215 = scalar_lea.hbm %s4, %s1214
          %s1216 = sshll.u32 %s1206, 4
          %s1217 = int_to_ptr.vmem [resolvable:$true] %s1216
          %1222 = dma.vmem_to_hbm [thread:$0]  %s1217, 2048, %s1215, %s1203, 128, 128, 8
        $region56: #{gat_layer.3} parent=35 // pred_fallthru
          _
      $region36: #{gat_layer.3} parent=5 // pred_fallthru
        _
      %p1223 = scmp.le.s32.totalorder 2, %s15
      // Predicated region
      $region57: #{gat_layer.3} parent=5 // pred_check
        %p1224 = pneg %p1223
      $region58: #{gat_layer.3} parent=5 // pred_check_branch
        %1226 = sbr.rel (%p1224) target = $region60
      $region59: #{gat_layer.3} parent=5 // pred_region
        %s1227 = ssub.s32 %s15, 2
        // Predicated region
        $region61: #{gat_layer.3} parent=59 // pred_check
          %p1228 = pneg %p138
        $region62: #{gat_layer.3} parent=59 // pred_check_branch
          %1230 = sbr.rel (%p1228) target = $region64
        $region63: #{gat_layer.3} parent=59 // pred_region
          %s1231 = sand.u32 %s123, 1
          %s1232 = scalar_lea.sflag [#allocation4], %s1231
          %s1233 = sand.u32 %s123, 1
          %s1234 = smul.addr %s1233, 128
          %s1235 = scalar_lea.vmem [#allocation9], %s1234
          %1236 = dma.done %s1232, 2048
        $region64: #{gat_layer.3} parent=59 // pred_fallthru
          _
      $region60: #{gat_layer.3} parent=5 // pred_fallthru
        _
    $region6: #{gat_layer.3} parent=1 // loop_footer
      %s19 = sadd.s32 1, %s15
    $region7: #{gat_layer.3} parent=1 // loop_footer_branch
      %14 = sbr.rel target = $region3
    $region8: #{gat_layer.3} parent=1 // loop_exit
      _
    %1237 = vsyncpa [#allocation3], 1
    %s1238 = scalar_lea.sflag [#allocation3], 1
    %1239 = vsyncpa %s1238, 1
    %1240 = vsyncpa [#allocation6], 1
    %1241 = vsyncpa [#allocation4], 1
    %s1242 = scalar_lea.sflag [#allocation4], 1
    %1243 = vsyncpa %s1242, 1

// kernel: gat_layer.2
$region0: #{gat_layer.2}
  #allocation0 [shape = 'u32[]', space=smem, size = 0x4, offset = 0x4, fixed_abs, tag = 'smem constant byte address 0x4 - core index']
  #allocation1 [shape = 'u32[144,128]{1,0:T(1,128)}', space=vmem, size = 0x12000, scoped, tag = 'internal scratch']
  %s0 = inlined_call_operand.hbm [shape: bf16[256,32], index: 0, kind: input, shape index: {}]
  %s1 = inlined_call_operand.hbm [shape: bf16[32,128], index: 1, kind: input, shape index: {}]
  %s2 = inlined_call_operand.hbm [shape: f32[1,128], index: 2, kind: input, shape index: {}]
  %s3 = inlined_call_operand.hbm [shape: f32[1,128], index: 3, kind: input, shape index: {}]
  %s4 = inlined_call_operand.hbm [shape: bf16[256,128], index: 4, kind: output, shape index: {0}]
  %s5 = inlined_call_operand.hbm [shape: f32[256,1], index: 5, kind: output, shape index: {1}]
  %s6 = inlined_call_operand.hbm [shape: f32[256,1], index: 6, kind: output, shape index: {2}]
  %7 = xla_tuple %s4, %s5, %s6
  %s8 = sld [smem:[#allocation0]]
  $region81: #{gat_layer.2} parent=0
    _
  %s10 = ssub.s32 1, %s8
  %s11 = scalar_select 0, %s10, %s8
  $region1: #{gat_layer.2} parent=0
    #allocation2 [shape = 'u8[65536]{0}', space=vmem, size = 0x10000, scoped, tag = 'input window, operand 0']
    #allocation3 [shape = 's32[2]{0}', space=sflag, size = 0x8, scoped, tag = 'scoped memory for gat_layer.2']
    #allocation4 [shape = 's32[2]{0}', space=sflag, size = 0x8, scoped, tag = 'scoped memory for gat_layer.2']
    #allocation5 [shape = 'u8[8192]{0}', space=vmem, size = 0x2000, scoped, tag = 'input window, operand 1, single buffered']
    #allocation6 [shape = 's32[1]{0}', space=sflag, size = 0x4, scoped, tag = 'scoped memory for gat_layer.2']
    #allocation7 [shape = 'u8[512]{0}', space=vmem, size = 0x400, scoped, tag = 'input window, operand 2, single buffered']
    #allocation8 [shape = 'u8[512]{0}', space=vmem, size = 0x400, scoped, tag = 'input window, operand 3, single buffered']
    #allocation9 [shape = 's32[1]{0}', space=sflag, size = 0x4, scoped, tag = 'scoped memory for gat_layer.2']
    #allocation10 [shape = 'u8[65536]{0}', space=vmem, size = 0x10000, scoped, tag = 'output window, operand 0']
    #allocation11 [shape = 'u8[131072]{0}', space=vmem, size = 0x20000, scoped, tag = 'output window, operand 1']
    #allocation12 [shape = 's32[2]{0}', space=sflag, size = 0x8, scoped, tag = 'scoped memory for gat_layer.2']
    #allocation13 [shape = 'u8[131072]{0}', space=vmem, size = 0x20000, scoped, tag = 'output window, operand 2']
    %12 = vsyncpa [#allocation3], 0
    %s13 = scalar_lea.sflag [#allocation3], 1
    %14 = vsyncpa %s13, 0
    %15 = vsyncpa [#allocation6], 0
    %16 = vsyncpa [#allocation9], 0
    %17 = vsyncpa [#allocation4], 0
    %s18 = scalar_lea.sflag [#allocation4], 1
    %19 = vsyncpa %s18, 0
    %20 = vsyncpa [#allocation12], 0
    %s21 = scalar_lea.sflag [#allocation12], 1
    %22 = vsyncpa %s21, 0
    loop: start=0, step=1, limit=4
    $region2: #{gat_layer.2} parent=1 // loop_pre_header
      _
    $region3: #{gat_layer.2} parent=1 // loop_header
      %s24 = sphi 0, %s28
      %p25 = scmp.ge.s32.totalorder %s24, 4
      %s34 = sphi 0, %s36
      %s37 = sphi 0, %s34
      %s38 = sphi 0, %s37
      %s54 = sphi 0, %s38
      %s58 = sphi 0, %s58
      %s60 = sphi 0, %s58
      %s61 = sphi 0, %s60
      %s75 = sphi 0, %s61
      %s79 = sphi 0, %s79
      %s81 = sphi 0, %s79
      %s82 = sphi 0, %s81
      %s96 = sphi 0, %s82
      %s100 = sphi 0, %s100
      %s102 = sphi 0, %s100
      %s103 = sphi 0, %s102
      %s117 = sphi 0, %s103
      %s123 = sphi 0, %s125
      %s126 = sphi 0, %s123
      %s127 = sphi 0, %s126
      %s143 = sphi 0, %s127
      %s149 = sphi 0, %s151
      %s152 = sphi 0, %s149
      %s153 = sphi 0, %s152
      %s169 = sphi 0, %s153
      %s175 = sphi 0, %s177
      %s178 = sphi 0, %s175
      %s179 = sphi 0, %s178
      %s195 = sphi 0, %s179
    $region4: #{gat_layer.2} parent=1 // loop_header_branch
      %27 = sbr.rel (%p25) target = $region8
    $region5: #{gat_layer.2} parent=1 // loop_body
      %s29 = ssub.s32 %s24, 1
      %s30 = ssub.s32 %s24, 2
      %s31 = sadd.s32 %s24, 1
      %s32 = ssub.s32 %s24, %s31
      %p33 = scmp.eq.s32.totalorder %s32, 0
      %s35 = sadd.s32 %s34, 1
      %s36 = scalar_select %p33, %s34, %s35
      %p39 = pneg %p33
      %p40 = scmp.eq.s32.totalorder %s24, 1
      %p41 = por %p39, %p40
      %p42 = scmp.ne.s32.totalorder %s34, %s37
      %p43 = scmp.eq.s32.totalorder %s24, 0
      %p44 = por %p42, %p43
      %p45 = scmp.ne.s32.totalorder %s34, %s37
      %p46 = scmp.eq.s32.totalorder %s29, 1
      %p47 = por %p45, %p46
      %p48 = scmp.ne.s32.totalorder %s37, %s38
      %p49 = scmp.eq.s32.totalorder %s29, 0
      %p50 = por %p48, %p49
      %p51 = scmp.ne.s32.totalorder %s37, %s38
      %p52 = scmp.eq.s32.totalorder %s30, 1
      %p53 = por %p51, %p52
      %p55 = scmp.ne.s32.totalorder %s38, %s54
      %p56 = scmp.eq.s32.totalorder %s30, 0
      %p57 = por %p55, %p56
      %s59 = sadd.s32 %s58, 1
      %p62 = scmp.eq.s32.totalorder %s24, 1
      %p63 = scmp.ne.s32.totalorder %s58, %s60
      %p64 = scmp.eq.s32.totalorder %s24, 0
      %p65 = por %p63, %p64
      %p66 = scmp.ne.s32.totalorder %s58, %s60
      %p67 = scmp.eq.s32.totalorder %s29, 1
      %p68 = por %p66, %p67
      %p69 = scmp.ne.s32.totalorder %s60, %s61
      %p70 = scmp.eq.s32.totalorder %s29, 0
      %p71 = por %p69, %p70
      %p72 = scmp.ne.s32.totalorder %s60, %s61
      %p73 = scmp.eq.s32.totalorder %s30, 1
      %p74 = por %p72, %p73
      %p76 = scmp.ne.s32.totalorder %s61, %s75
      %p77 = scmp.eq.s32.totalorder %s30, 0
      %p78 = por %p76, %p77
      %s80 = sadd.s32 %s79, 1
      %p83 = scmp.eq.s32.totalorder %s24, 1
      %p84 = scmp.ne.s32.totalorder %s79, %s81
      %p85 = scmp.eq.s32.totalorder %s24, 0
      %p86 = por %p84, %p85
      %p87 = scmp.ne.s32.totalorder %s79, %s81
      %p88 = scmp.eq.s32.totalorder %s29, 1
      %p89 = por %p87, %p88
      %p90 = scmp.ne.s32.totalorder %s81, %s82
      %p91 = scmp.eq.s32.totalorder %s29, 0
      %p92 = por %p90, %p91
      %p93 = scmp.ne.s32.totalorder %s81, %s82
      %p94 = scmp.eq.s32.totalorder %s30, 1
      %p95 = por %p93, %p94
      %p97 = scmp.ne.s32.totalorder %s82, %s96
      %p98 = scmp.eq.s32.totalorder %s30, 0
      %p99 = por %p97, %p98
      %s101 = sadd.s32 %s100, 1
      %p104 = scmp.eq.s32.totalorder %s24, 1
      %p105 = scmp.ne.s32.totalorder %s100, %s102
      %p106 = scmp.eq.s32.totalorder %s24, 0
      %p107 = por %p105, %p106
      %p108 = scmp.ne.s32.totalorder %s100, %s102
      %p109 = scmp.eq.s32.totalorder %s29, 1
      %p110 = por %p108, %p109
      %p111 = scmp.ne.s32.totalorder %s102, %s103
      %p112 = scmp.eq.s32.totalorder %s29, 0
      %p113 = por %p111, %p112
      %p114 = scmp.ne.s32.totalorder %s102, %s103
      %p115 = scmp.eq.s32.totalorder %s30, 1
      %p116 = por %p114, %p115
      %p118 = scmp.ne.s32.totalorder %s103, %s117
      %p119 = scmp.eq.s32.totalorder %s30, 0
      %p120 = por %p118, %p119
      %s121 = ssub.s32 %s24, %s31
      %p122 = scmp.eq.s32.totalorder %s121, 0
      %s124 = sadd.s32 %s123, 1
      %s125 = scalar_select %p122, %s123, %s124
      %p128 = pneg %p122
      %p129 = scmp.eq.s32.totalorder %s24, 1
      %p130 = por %p128, %p129
      %p131 = scmp.ne.s32.totalorder %s123, %s126
      %p132 = scmp.eq.s32.totalorder %s24, 0
      %p133 = por %p131, %p132
      %p134 = scmp.ne.s32.totalorder %s123, %s126
      %p135 = scmp.eq.s32.totalorder %s29, 1
      %p136 = por %p134, %p135
      %p137 = scmp.ne.s32.totalorder %s126, %s127
      %p138 = scmp.eq.s32.totalorder %s29, 0
      %p139 = por %p137, %p138
      %p140 = scmp.ne.s32.totalorder %s126, %s127
      %p141 = scmp.eq.s32.totalorder %s30, 1
      %p142 = por %p140, %p141
      %p144 = scmp.ne.s32.totalorder %s127, %s143
      %p145 = scmp.eq.s32.totalorder %s30, 0
      %p146 = por %p144, %p145
      %s147 = ssub.s32 %s24, %s31
      %p148 = scmp.eq.s32.totalorder %s147, 0
      %s150 = sadd.s32 %s149, 1
      %s151 = scalar_select %p148, %s149, %s150
      %p154 = pneg %p148
      %p155 = scmp.eq.s32.totalorder %s24, 1
      %p156 = por %p154, %p155
      %p157 = scmp.ne.s32.totalorder %s149, %s152
      %p158 = scmp.eq.s32.totalorder %s24, 0
      %p159 = por %p157, %p158
      %p160 = scmp.ne.s32.totalorder %s149, %s152
      %p161 = scmp.eq.s32.totalorder %s29, 1
      %p162 = por %p160, %p161
      %p163 = scmp.ne.s32.totalorder %s152, %s153
      %p164 = scmp.eq.s32.totalorder %s29, 0
      %p165 = por %p163, %p164
      %p166 = scmp.ne.s32.totalorder %s152, %s153
      %p167 = scmp.eq.s32.totalorder %s30, 1
      %p168 = por %p166, %p167
      %p170 = scmp.ne.s32.totalorder %s153, %s169
      %p171 = scmp.eq.s32.totalorder %s30, 0
      %p172 = por %p170, %p171
      %s173 = ssub.s32 %s24, %s31
      %p174 = scmp.eq.s32.totalorder %s173, 0
      %s176 = sadd.s32 %s175, 1
      %s177 = scalar_select %p174, %s175, %s176
      %p180 = pneg %p174
      %p181 = scmp.eq.s32.totalorder %s24, 1
      %p182 = por %p180, %p181
      %p183 = scmp.ne.s32.totalorder %s175, %s178
      %p184 = scmp.eq.s32.totalorder %s24, 0
      %p185 = por %p183, %p184
      %p186 = scmp.ne.s32.totalorder %s175, %s178
      %p187 = scmp.eq.s32.totalorder %s29, 1
      %p188 = por %p186, %p187
      %p189 = scmp.ne.s32.totalorder %s178, %s179
      %p190 = scmp.eq.s32.totalorder %s29, 0
      %p191 = por %p189, %p190
      %p192 = scmp.ne.s32.totalorder %s178, %s179
      %p193 = scmp.eq.s32.totalorder %s30, 1
      %p194 = por %p192, %p193
      %p196 = scmp.ne.s32.totalorder %s179, %s195
      %p197 = scmp.eq.s32.totalorder %s30, 0
      %p198 = por %p196, %p197
      %p199 = scmp.le.s32.totalorder 1, %s24
      %p200 = scmp.lt.s32.totalorder %s24, 3
      %p201 = pnand %p199, %p200
      %p202 = pneg %p201
      // Predicated region
      $region9: #{gat_layer.2} parent=5 // pred_check
        _
      $region10: #{gat_layer.2} parent=5 // pred_check_branch
        %204 = sbr.rel (%p201) target = $region12
      $region11: #{gat_layer.2} parent=5 // pred_region
        %s205 = ssub.s32 %s24, 1
        // Predicated region
        $region13: #{gat_layer.2} parent=11 // pred_check
          %p206 = pneg %p71
        $region14: #{gat_layer.2} parent=11 // pred_check_branch
          %208 = sbr.rel (%p206) target = $region16
        $region15: #{gat_layer.2} parent=11 // pred_region
          %s210 = ssub.s32 256, 256
          %211 = vsyncadd [#allocation6], %s210
          %s212 = sshll.u32 [#allocation5], 4
          %s213 = int_to_ptr.vmem [resolvable:$true] %s212
          %218 = dma.hbm_to_vmem [thread:$0]  %s1, 256, %s213, [#allocation6], 64, 64, 4
        $region16: #{gat_layer.2} parent=11 // pred_fallthru
          _
        // Predicated region
        $region17: #{gat_layer.2} parent=11 // pred_check
          %p219 = pneg %p92
        $region18: #{gat_layer.2} parent=11 // pred_check_branch
          %221 = sbr.rel (%p219) target = $region20
        $region19: #{gat_layer.2} parent=11 // pred_region
          %s223 = ssub.s32 16, 16
          %224 = vsyncadd [#allocation6], %s223
          %s226 = sshll.u32 [#allocation7], 4
          %s227 = int_to_ptr.vmem [resolvable:$true] %s226
          %229 = dma.hbm_to_vmem [thread:$0]  %s2, 16, %s227, [#allocation6]
        $region20: #{gat_layer.2} parent=11 // pred_fallthru
          _
        // Predicated region
        $region21: #{gat_layer.2} parent=11 // pred_check
          %p230 = pneg %p113
        $region22: #{gat_layer.2} parent=11 // pred_check_branch
          %232 = sbr.rel (%p230) target = $region24
        $region23: #{gat_layer.2} parent=11 // pred_region
          %s234 = ssub.s32 16, 16
          %235 = vsyncadd [#allocation9], %s234
          %s237 = sshll.u32 [#allocation8], 4
          %s238 = int_to_ptr.vmem [resolvable:$true] %s237
          %240 = dma.hbm_to_vmem [thread:$0]  %s3, 16, %s238, [#allocation9]
        $region24: #{gat_layer.2} parent=11 // pred_fallthru
          _
      $region12: #{gat_layer.2} parent=5 // pred_fallthru
        _
      %p241 = scmp.lt.s32.totalorder %s24, 2
      // Predicated region
      $region25: #{gat_layer.2} parent=5 // pred_check
        %p242 = pneg %p241
      $region26: #{gat_layer.2} parent=5 // pred_check_branch
        %244 = sbr.rel (%p242) target = $region28
      $region27: #{gat_layer.2} parent=5 // pred_region
        // Predicated region
        $region29: #{gat_layer.2} parent=27 // pred_check
          %p245 = pneg %p44
        $region30: #{gat_layer.2} parent=27 // pred_check_branch
          %247 = sbr.rel (%p245) target = $region32
        $region31: #{gat_layer.2} parent=27 // pred_region
          %s248 = sand.u32 %s34, 1
          %s249 = scalar_lea.sflag [#allocation3], %s248
          %s250 = sand.u32 %s34, 1
          %s251 = smul.addr %s250, 64
          %s252 = scalar_lea.vmem [#allocation2], %s251
          %s253 = smul.u32 16, %s24
          %s255 = ssub.s32 1024, 1024
          %256 = vsyncadd %s249, %s255
          %s257 = smul.addr %s253, 64
          %s258 = scalar_lea.hbm %s0, %s257
          %s259 = sshll.u32 %s252, 4
          %s260 = int_to_ptr.vmem [resolvable:$true] %s259
          %265 = dma.hbm_to_vmem [thread:$0]  %s258, 1024, %s260, %s249, 64, 64, 4
        $region32: #{gat_layer.2} parent=27 // pred_fallthru
          _
      $region28: #{gat_layer.2} parent=5 // pred_fallthru
        _
      %p266 = scmp.le.s32.totalorder 1, %s24
      %p267 = scmp.lt.s32.totalorder %s24, 3
      %p268 = pnand %p266, %p267
      %p269 = pneg %p268
      // Predicated region
      $region33: #{gat_layer.2} parent=5 // pred_check
        _
      $region34: #{gat_layer.2} parent=5 // pred_check_branch
        %271 = sbr.rel (%p268) target = $region36
      $region35: #{gat_layer.2} parent=5 // pred_region
        %s272 = ssub.s32 %s24, 1
        %s273 = sand.u32 %s37, 1
        %s274 = scalar_lea.sflag [#allocation3], %s273
        %s275 = sand.u32 %s37, 1
        %s276 = smul.addr %s275, 64
        %s277 = scalar_lea.vmem [#allocation2], %s276
        // Predicated region
        $region37: #{gat_layer.2} parent=35 // pred_check
          %p278 = pneg %p50
        $region38: #{gat_layer.2} parent=35 // pred_check_branch
          %280 = sbr.rel (%p278) target = $region40
        $region39: #{gat_layer.2} parent=35 // pred_region
          %281 = dma.done %s274, 1024
        $region40: #{gat_layer.2} parent=35 // pred_fallthru
          _
        // Predicated region
        $region41: #{gat_layer.2} parent=35 // pred_check
          %p282 = pneg %p71
        $region42: #{gat_layer.2} parent=35 // pred_check_branch
          %284 = sbr.rel (%p282) target = $region44
        $region43: #{gat_layer.2} parent=35 // pred_region
          %285 = dma.done [#allocation6], 256
        $region44: #{gat_layer.2} parent=35 // pred_fallthru
          _
        // Predicated region
        $region45: #{gat_layer.2} parent=35 // pred_check
          %p286 = pneg %p92
        $region46: #{gat_layer.2} parent=35 // pred_check_branch
          %288 = sbr.rel (%p286) target = $region48
        $region47: #{gat_layer.2} parent=35 // pred_region
          %289 = dma.done [#allocation6], 16
        $region48: #{gat_layer.2} parent=35 // pred_fallthru
          _
        // Predicated region
        $region49: #{gat_layer.2} parent=35 // pred_check
          %p290 = pneg %p113
        $region50: #{gat_layer.2} parent=35 // pred_check_branch
          %292 = sbr.rel (%p290) target = $region52
        $region51: #{gat_layer.2} parent=35 // pred_region
          %293 = dma.done [#allocation9], 16
        $region52: #{gat_layer.2} parent=35 // pred_fallthru
          _
        %s294 = sand.u32 %s37, 1
        %s295 = scalar_lea.sflag [#allocation3], %s294
        %s296 = sand.u32 %s37, 1
        %s297 = smul.addr %s296, 64
        %s298 = scalar_lea.vmem [#allocation2], %s297
        %p299 = pneg %p50
        %p300 = pneg %p47
        %p301 = pneg %p71
        %p302 = pneg %p68
        %p303 = pneg %p92
        %p304 = pneg %p89
        %p305 = pneg %p113
        %p306 = pneg %p110
        %p307 = pneg %p139
        %p308 = pneg %p136
        %s309 = sand.u32 %s126, 1
        %s310 = scalar_lea.sflag [#allocation4], %s309
        %s311 = sand.u32 %s126, 1
        %s312 = smul.addr %s311, 64
        %s313 = scalar_lea.vmem [#allocation10], %s312
        %p314 = pneg %p165
        %p315 = pneg %p162
        %s316 = sand.u32 %s29, 1
        %s317 = scalar_lea.sflag [#allocation12], %s316
        %s318 = sand.u32 %s152, 1
        %s319 = smul.addr %s318, 128
        %s320 = scalar_lea.vmem [#allocation11], %s319
        %p321 = pneg %p191
        %p322 = pneg %p188
        %s323 = sand.u32 %s29, 1
        %s324 = scalar_lea.sflag [#allocation12], %s323
        %s325 = sand.u32 %s178, 1
        %s326 = smul.addr %s325, 128
        %s327 = scalar_lea.vmem [#allocation13], %s326
        %s328 = smul.u32 16, %s29
        %s329 = smul.u32 16, %s29
        %s330 = smul.u32 16, %s29
        %s331 = smul.u32 16, %s29
        %v333 = vld [vmem:[%s277] sm:$0xf]
        %v334 = vld [vmem:[%s277 + $0x4] sm:$0xf]
        %v335 = vld [vmem:[%s277 + $0x8] sm:$0xf]
        %v336 = vld [vmem:[%s277 + $0xc] sm:$0xf]
        %v337 = vld [vmem:[%s277 + $0x10] sm:$0xf]
        %v338 = vld [vmem:[%s277 + $0x14] sm:$0xf]
        %v339 = vld [vmem:[%s277 + $0x18] sm:$0xf]
        %v340 = vld [vmem:[%s277 + $0x1c] sm:$0xf]
        %v341 = vld [vmem:[%s277 + $0x20] sm:$0xf]
        %v342 = vld [vmem:[%s277 + $0x24] sm:$0xf]
        %v343 = vld [vmem:[%s277 + $0x28] sm:$0xf]
        %v344 = vld [vmem:[%s277 + $0x2c] sm:$0xf]
        %v345 = vld [vmem:[%s277 + $0x30] sm:$0xf]
        %v346 = vld [vmem:[%s277 + $0x34] sm:$0xf]
        %v347 = vld [vmem:[%s277 + $0x38] sm:$0xf]
        %v348 = vld [vmem:[%s277 + $0x3c] sm:$0xf]
        %v349 = vld [vmem:[#allocation5] sm:$0xf]
        %v350 = vld [vmem:[#allocation5 + $0x4] sm:$0xf]
        %v351 = vld [vmem:[#allocation5 + $0x8] sm:$0xf]
        %v352 = vld [vmem:[#allocation5 + $0xc] sm:$0xf]
        %v369 = vunpack.c.l.b16 %v333
        %v370 = vunpack.c.l.b16 %v334
        %v371 = vunpack.c.l.b16 %v335
        %v372 = vunpack.c.l.b16 %v336
        %v373 = vunpack.c.l.b16 %v337
        %v374 = vunpack.c.l.b16 %v338
        %v375 = vunpack.c.l.b16 %v339
        %v376 = vunpack.c.l.b16 %v340
        %v377 = vunpack.c.l.b16 %v341
        %v378 = vunpack.c.l.b16 %v342
        %v379 = vunpack.c.l.b16 %v343
        %v380 = vunpack.c.l.b16 %v344
        %v381 = vunpack.c.l.b16 %v345
        %v382 = vunpack.c.l.b16 %v346
        %v383 = vunpack.c.l.b16 %v347
        %v384 = vunpack.c.l.b16 %v348
        %v385 = vpack.c.b16 %v370, %v369
        %v386 = vpack.c.b16 %v372, %v371
        %v387 = vpack.c.b16 %v374, %v373
        %v388 = vpack.c.b16 %v376, %v375
        %v389 = vpack.c.b16 %v378, %v377
        %v390 = vpack.c.b16 %v380, %v379
        %v391 = vpack.c.b16 %v382, %v381
        %v392 = vpack.c.b16 %v384, %v383
        %v397 = vunpack.c.l.b16 %v349
        %v398 = vunpack.c.l.b16 %v350
        %v399 = vunpack.c.l.b16 %v351
        %v400 = vunpack.c.l.b16 %v352
        %v401 = vpack.c.b16 %v398, %v397
        %v402 = vpack.c.b16 %v400, %v399
        %vm405 = vcmask 261120
        %v407 = vsel %vm405, %v385, 0
        %v410 = vsel %vm405, %v386, 0
        %v413 = vsel %vm405, %v387, 0
        %v416 = vsel %vm405, %v388, 0
        %v419 = vsel %vm405, %v389, 0
        %v422 = vsel %vm405, %v390, 0
        %v425 = vsel %vm405, %v391, 0
        %v428 = vsel %vm405, %v392, 0
        %430 = vmatprep.subr.bf16.mxu0 0
        %431 = vmatpush1.bf16.msra.mxu0 %v401
        %432 = vmatprep.subr.bf16.mxu0 0
        %433 = vmatpush1.bf16.msra.mxu0 %v402
        %434 = vmatprep.subr.bf16.mxu0 0
        %435 = vmatpush1.bf16.msra.mxu0 0
        %436 = vmatprep.subr.bf16.mxu0 0
        %437 = vmatpush1.bf16.msra.mxu0 0
        %438 = vmatprep.subr.bf16.mxu0 0
        %439 = vmatpush1.bf16.msra.mxu0 0
        %440 = vmatprep.subr.bf16.mxu0 0
        %441 = vmatpush1.bf16.msra.mxu0 0
        %442 = vmatprep.subr.bf16.mxu0 0
        %443 = vmatpush1.bf16.msra.mxu0 0
        %444 = vmatprep.subr.bf16.mxu0 0
        %445 = vmatpush1.bf16.msra.mxu0 0
        %446 = vmatprep.subr.bf16.mxu0 0
        %447 = vmatpush1.bf16.msra.mxu0 0
        %448 = vmatprep.subr.bf16.mxu0 0
        %449 = vmatpush1.bf16.msra.mxu0 0
        %450 = vmatprep.subr.bf16.mxu0 0
        %451 = vmatpush1.bf16.msra.mxu0 0
        %452 = vmatprep.subr.bf16.mxu0 0
        %453 = vmatpush1.bf16.msra.mxu0 0
        %454 = vmatprep.subr.bf16.mxu0 0
        %455 = vmatpush1.bf16.msra.mxu0 0
        %456 = vmatprep.subr.bf16.mxu0 0
        %457 = vmatpush1.bf16.msra.mxu0 0
        %458 = vmatprep.subr.bf16.mxu0 0
        %459 = vmatpush1.bf16.msra.mxu0 0
        %460 = vmatprep.subr.bf16.mxu0 0
        %461 = vmatpush1.bf16.msra.mxu0 0
        %462 = vmatprep.mubr.bf16.mxu0 0
        %463 = vmatmul.mubr.bf16.gmra.mrb[0].mxu0 %v407
        %v464 = vpop.f32.mrb[0].mxu0
        %v465 = vadd.f32 0.0, %v464
        %v466 = vpop.f32.mrb[0].mxu0
        %v467 = vpop.f32.mrb[0].mxu0
        %v468 = vadd.f32 0.0, %v467
        %v469 = vpop.f32.mrb[0].mxu0
        %470 = vmatprep.mubr.bf16.mxu0 0
        %471 = vmatmul.mubr.bf16.gmra.mrb[0].mxu0 %v410
        %v472 = vpop.f32.mrb[0].mxu0
        %v473 = vadd.f32 0.0, %v472
        %v474 = vpop.f32.mrb[0].mxu0
        %v475 = vpop.f32.mrb[0].mxu0
        %v476 = vadd.f32 0.0, %v475
        %v477 = vpop.f32.mrb[0].mxu0
        %478 = vmatprep.mubr.bf16.mxu0 0
        %479 = vmatmul.mubr.bf16.gmra.mrb[0].mxu0 %v413
        %v480 = vpop.f32.mrb[0].mxu0
        %v481 = vadd.f32 0.0, %v480
        %v482 = vpop.f32.mrb[0].mxu0
        %v483 = vpop.f32.mrb[0].mxu0
        %v484 = vadd.f32 0.0, %v483
        %v485 = vpop.f32.mrb[0].mxu0
        %486 = vmatprep.mubr.bf16.mxu0 0
        %487 = vmatmul.mubr.bf16.gmra.mrb[0].mxu0 %v416
        %v488 = vpop.f32.mrb[0].mxu0
        %v489 = vadd.f32 0.0, %v488
        %v490 = vpop.f32.mrb[0].mxu0
        %v491 = vpop.f32.mrb[0].mxu0
        %v492 = vadd.f32 0.0, %v491
        %v493 = vpop.f32.mrb[0].mxu0
        %494 = vmatprep.mubr.bf16.mxu0 0
        %495 = vmatmul.mubr.bf16.gmra.mrb[0].mxu0 %v419
        %v496 = vpop.f32.mrb[0].mxu0
        %v497 = vadd.f32 0.0, %v496
        %v498 = vpop.f32.mrb[0].mxu0
        %v499 = vpop.f32.mrb[0].mxu0
        %v500 = vadd.f32 0.0, %v499
        %v501 = vpop.f32.mrb[0].mxu0
        %502 = vmatprep.mubr.bf16.mxu0 0
        %503 = vmatmul.mubr.bf16.gmra.mrb[0].mxu0 %v422
        %v504 = vpop.f32.mrb[0].mxu0
        %v505 = vadd.f32 0.0, %v504
        %v506 = vpop.f32.mrb[0].mxu0
        %v507 = vpop.f32.mrb[0].mxu0
        %v508 = vadd.f32 0.0, %v507
        %v509 = vpop.f32.mrb[0].mxu0
        %510 = vmatprep.mubr.bf16.mxu0 0
        %511 = vmatmul.mubr.bf16.gmra.mrb[0].mxu0 %v425
        %v512 = vpop.f32.mrb[0].mxu0
        %v513 = vadd.f32 0.0, %v512
        %v514 = vpop.f32.mrb[0].mxu0
        %v515 = vpop.f32.mrb[0].mxu0
        %v516 = vadd.f32 0.0, %v515
        %v517 = vpop.f32.mrb[0].mxu0
        %518 = vmatprep.mubr.bf16.mxu0 0
        %519 = vmatmul.mubr.bf16.gmra.mrb[0].mxu0 %v428
        %v520 = vpop.f32.mrb[0].mxu0
        %v521 = vadd.f32 0.0, %v520
        %v522 = vpop.f32.mrb[0].mxu0
        %v523 = vpop.f32.mrb[0].mxu0
        %v524 = vadd.f32 0.0, %v523
        %v525 = vpop.f32.mrb[0].mxu0
        %526 = vdwg.mxu0
        %v527 = vld [vmem:[#allocation7] sm:$0x1]
        %v529 = vlaneseq
        %v530 = vshrl.u32 %v529, 7
        %v531 = vsub.s32 0, %v530
        %v532 = vrot.slane %v527, %v531
        %v534 = vmul.f32 %v465, %v532
        %v535 = vmul.f32 %v468, %v532
        %v536 = vmul.f32 %v473, %v532
        %v537 = vmul.f32 %v476, %v532
        %v538 = vmul.f32 %v481, %v532
        %v539 = vmul.f32 %v484, %v532
        %v540 = vmul.f32 %v489, %v532
        %v541 = vmul.f32 %v492, %v532
        %v542 = vmul.f32 %v497, %v532
        %v543 = vmul.f32 %v500, %v532
        %v544 = vmul.f32 %v505, %v532
        %v545 = vmul.f32 %v508, %v532
        %v546 = vmul.f32 %v513, %v532
        %v547 = vmul.f32 %v516, %v532
        %v548 = vmul.f32 %v521, %v532
        %v549 = vmul.f32 %v524, %v532
        %550 = vadd.xlane.f32.xlu0 %v534
        %v551 = vpop.xlane.xlu0 %550
        %552 = vadd.xlane.f32.xlu0 %v535
        %v553 = vpop.xlane.xlu0 %552
        %554 = vadd.xlane.f32.xlu0 %v536
        %v555 = vpop.xlane.xlu0 %554
        %556 = vadd.xlane.f32.xlu0 %v537
        %v557 = vpop.xlane.xlu0 %556
        %558 = vadd.xlane.f32.xlu0 %v538
        %v559 = vpop.xlane.xlu0 %558
        %560 = vadd.xlane.f32.xlu0 %v539
        %v561 = vpop.xlane.xlu0 %560
        %562 = vadd.xlane.f32.xlu0 %v540
        %v563 = vpop.xlane.xlu0 %562
        %564 = vadd.xlane.f32.xlu0 %v541
        %v565 = vpop.xlane.xlu0 %564
        %566 = vadd.xlane.f32.xlu0 %v542
        %v567 = vpop.xlane.xlu0 %566
        %568 = vadd.xlane.f32.xlu0 %v543
        %v569 = vpop.xlane.xlu0 %568
        %570 = vadd.xlane.f32.xlu0 %v544
        %v571 = vpop.xlane.xlu0 %570
        %572 = vadd.xlane.f32.xlu0 %v545
        %v573 = vpop.xlane.xlu0 %572
        %574 = vadd.xlane.f32.xlu0 %v546
        %v575 = vpop.xlane.xlu0 %574
        %576 = vadd.xlane.f32.xlu0 %v547
        %v577 = vpop.xlane.xlu0 %576
        %578 = vadd.xlane.f32.xlu0 %v548
        %v579 = vpop.xlane.xlu0 %578
        %580 = vadd.xlane.f32.xlu0 %v549
        %v581 = vpop.xlane.xlu0 %580
        %vm582 = vcmask 7168
        %583 = vst.msk [vmem:[%s320] sm:$0xff] %vm582, %v551
        %584 = vst.msk [vmem:[%s320 + $0x8] sm:$0xff] %vm582, %v553
        %585 = vst.msk [vmem:[%s320 + $0x10] sm:$0xff] %vm582, %v555
        %586 = vst.msk [vmem:[%s320 + $0x18] sm:$0xff] %vm582, %v557
        %587 = vst.msk [vmem:[%s320 + $0x20] sm:$0xff] %vm582, %v559
        %588 = vst.msk [vmem:[%s320 + $0x28] sm:$0xff] %vm582, %v561
        %589 = vst.msk [vmem:[%s320 + $0x30] sm:$0xff] %vm582, %v563
        %590 = vst.msk [vmem:[%s320 + $0x38] sm:$0xff] %vm582, %v565
        %591 = vst.msk [vmem:[%s320 + $0x40] sm:$0xff] %vm582, %v567
        %592 = vst.msk [vmem:[%s320 + $0x48] sm:$0xff] %vm582, %v569
        %593 = vst.msk [vmem:[%s320 + $0x50] sm:$0xff] %vm582, %v571
        %594 = vst.msk [vmem:[%s320 + $0x58] sm:$0xff] %vm582, %v573
        %595 = vst.msk [vmem:[%s320 + $0x60] sm:$0xff] %vm582, %v575
        %596 = vst.msk [vmem:[%s320 + $0x68] sm:$0xff] %vm582, %v577
        %597 = vst.msk [vmem:[%s320 + $0x70] sm:$0xff] %vm582, %v579
        %598 = vst.msk [vmem:[%s320 + $0x78] sm:$0xff] %vm582, %v581
        %v599 = vld [vmem:[#allocation8] sm:$0x1]
        %v601 = vlaneseq
        %v602 = vshrl.u32 %v601, 7
        %v603 = vsub.s32 0, %v602
        %v604 = vrot.slane %v599, %v603
        %v606 = vmul.f32 %v465, %v604
        %v607 = vmul.f32 %v468, %v604
        %v608 = vmul.f32 %v473, %v604
        %v609 = vmul.f32 %v476, %v604
        %v610 = vmul.f32 %v481, %v604
        %v611 = vmul.f32 %v484, %v604
        %v612 = vmul.f32 %v489, %v604
        %v613 = vmul.f32 %v492, %v604
        %v614 = vmul.f32 %v497, %v604
        %v615 = vmul.f32 %v500, %v604
        %v616 = vmul.f32 %v505, %v604
        %v617 = vmul.f32 %v508, %v604
        %v618 = vmul.f32 %v513, %v604
        %v619 = vmul.f32 %v516, %v604
        %v620 = vmul.f32 %v521, %v604
        %v621 = vmul.f32 %v524, %v604
        %622 = vadd.xlane.f32.xlu0 %v606
        %v623 = vpop.xlane.xlu0 %622
        %624 = vadd.xlane.f32.xlu0 %v607
        %v625 = vpop.xlane.xlu0 %624
        %626 = vadd.xlane.f32.xlu0 %v608
        %v627 = vpop.xlane.xlu0 %626
        %628 = vadd.xlane.f32.xlu0 %v609
        %v629 = vpop.xlane.xlu0 %628
        %630 = vadd.xlane.f32.xlu0 %v610
        %v631 = vpop.xlane.xlu0 %630
        %632 = vadd.xlane.f32.xlu0 %v611
        %v633 = vpop.xlane.xlu0 %632
        %634 = vadd.xlane.f32.xlu0 %v612
        %v635 = vpop.xlane.xlu0 %634
        %636 = vadd.xlane.f32.xlu0 %v613
        %v637 = vpop.xlane.xlu0 %636
        %638 = vadd.xlane.f32.xlu0 %v614
        %v639 = vpop.xlane.xlu0 %638
        %640 = vadd.xlane.f32.xlu0 %v615
        %v641 = vpop.xlane.xlu0 %640
        %642 = vadd.xlane.f32.xlu0 %v616
        %v643 = vpop.xlane.xlu0 %642
        %644 = vadd.xlane.f32.xlu0 %v617
        %v645 = vpop.xlane.xlu0 %644
        %646 = vadd.xlane.f32.xlu0 %v618
        %v647 = vpop.xlane.xlu0 %646
        %648 = vadd.xlane.f32.xlu0 %v619
        %v649 = vpop.xlane.xlu0 %648
        %650 = vadd.xlane.f32.xlu0 %v620
        %v651 = vpop.xlane.xlu0 %650
        %652 = vadd.xlane.f32.xlu0 %v621
        %v653 = vpop.xlane.xlu0 %652
        %654 = vst.msk [vmem:[%s327] sm:$0xff] %vm582, %v623
        %655 = vst.msk [vmem:[%s327 + $0x8] sm:$0xff] %vm582, %v625
        %656 = vst.msk [vmem:[%s327 + $0x10] sm:$0xff] %vm582, %v627
        %657 = vst.msk [vmem:[%s327 + $0x18] sm:$0xff] %vm582, %v629
        %658 = vst.msk [vmem:[%s327 + $0x20] sm:$0xff] %vm582, %v631
        %659 = vst.msk [vmem:[%s327 + $0x28] sm:$0xff] %vm582, %v633
        %660 = vst.msk [vmem:[%s327 + $0x30] sm:$0xff] %vm582, %v635
        %661 = vst.msk [vmem:[%s327 + $0x38] sm:$0xff] %vm582, %v637
        %662 = vst.msk [vmem:[%s327 + $0x40] sm:$0xff] %vm582, %v639
        %663 = vst.msk [vmem:[%s327 + $0x48] sm:$0xff] %vm582, %v641
        %664 = vst.msk [vmem:[%s327 + $0x50] sm:$0xff] %vm582, %v643
        %665 = vst.msk [vmem:[%s327 + $0x58] sm:$0xff] %vm582, %v645
        %666 = vst.msk [vmem:[%s327 + $0x60] sm:$0xff] %vm582, %v647
        %667 = vst.msk [vmem:[%s327 + $0x68] sm:$0xff] %vm582, %v649
        %668 = vst.msk [vmem:[%s327 + $0x70] sm:$0xff] %vm582, %v651
        %669 = vst.msk [vmem:[%s327 + $0x78] sm:$0xff] %vm582, %v653
        %v670 = vpack.c.bf16 %v468, %v465
        %v671 = vpack.c.bf16 %v476, %v473
        %v672 = vpack.c.bf16 %v484, %v481
        %v673 = vpack.c.bf16 %v492, %v489
        %v674 = vpack.c.bf16 %v500, %v497
        %v675 = vpack.c.bf16 %v508, %v505
        %v676 = vpack.c.bf16 %v516, %v513
        %v677 = vpack.c.bf16 %v524, %v521
        %v686 = vunpack.c.l.b16 %v670
        %v687 = vunpack.c.h.b16 %v670
        %v688 = vunpack.c.l.b16 %v671
        %v689 = vunpack.c.h.b16 %v671
        %v690 = vunpack.c.l.b16 %v672
        %v691 = vunpack.c.h.b16 %v672
        %v692 = vunpack.c.l.b16 %v673
        %v693 = vunpack.c.h.b16 %v673
        %v694 = vunpack.c.l.b16 %v674
        %v695 = vunpack.c.h.b16 %v674
        %v696 = vunpack.c.l.b16 %v675
        %v697 = vunpack.c.h.b16 %v675
        %v698 = vunpack.c.l.b16 %v676
        %v699 = vunpack.c.h.b16 %v676
        %v700 = vunpack.c.l.b16 %v677
        %v701 = vunpack.c.h.b16 %v677
        %v702 = vpack.c.b16 %v686, %v686
        %v703 = vpack.c.b16 %v687, %v687
        %v704 = vpack.c.b16 %v688, %v688
        %v705 = vpack.c.b16 %v689, %v689
        %v706 = vpack.c.b16 %v690, %v690
        %v707 = vpack.c.b16 %v691, %v691
        %v708 = vpack.c.b16 %v692, %v692
        %v709 = vpack.c.b16 %v693, %v693
        %v710 = vpack.c.b16 %v694, %v694
        %v711 = vpack.c.b16 %v695, %v695
        %v712 = vpack.c.b16 %v696, %v696
        %v713 = vpack.c.b16 %v697, %v697
        %v714 = vpack.c.b16 %v698, %v698
        %v715 = vpack.c.b16 %v699, %v699
        %v716 = vpack.c.b16 %v700, %v700
        %v717 = vpack.c.b16 %v701, %v701
        %734 = vst [vmem:[%s313] sm:$0xf] %v702
        %735 = vst [vmem:[%s313 + $0x4] sm:$0xf] %v703
        %736 = vst [vmem:[%s313 + $0x8] sm:$0xf] %v704
        %737 = vst [vmem:[%s313 + $0xc] sm:$0xf] %v705
        %738 = vst [vmem:[%s313 + $0x10] sm:$0xf] %v706
        %739 = vst [vmem:[%s313 + $0x14] sm:$0xf] %v707
        %740 = vst [vmem:[%s313 + $0x18] sm:$0xf] %v708
        %741 = vst [vmem:[%s313 + $0x1c] sm:$0xf] %v709
        %742 = vst [vmem:[%s313 + $0x20] sm:$0xf] %v710
        %743 = vst [vmem:[%s313 + $0x24] sm:$0xf] %v711
        %744 = vst [vmem:[%s313 + $0x28] sm:$0xf] %v712
        %745 = vst [vmem:[%s313 + $0x2c] sm:$0xf] %v713
        %746 = vst [vmem:[%s313 + $0x30] sm:$0xf] %v714
        %747 = vst [vmem:[%s313 + $0x34] sm:$0xf] %v715
        %748 = vst [vmem:[%s313 + $0x38] sm:$0xf] %v716
        %749 = vst [vmem:[%s313 + $0x3c] sm:$0xf] %v717
        %s750 = sand.u32 %s126, 1
        %s751 = scalar_lea.sflag [#allocation4], %s750
        %s752 = sand.u32 %s126, 1
        %s753 = smul.addr %s752, 64
        %s754 = scalar_lea.vmem [#allocation10], %s753
        %s755 = sand.u32 %s29, 1
        %s756 = scalar_lea.sflag [#allocation12], %s755
        %s757 = sand.u32 %s152, 1
        %s758 = smul.addr %s757, 128
        %s759 = scalar_lea.vmem [#allocation11], %s758
        %s760 = sand.u32 %s29, 1
        %s761 = scalar_lea.sflag [#allocation12], %s760
        %s762 = sand.u32 %s178, 1
        %s763 = smul.addr %s762, 128
        %s764 = scalar_lea.vmem [#allocation13], %s763
        // Predicated region
        $region53: #{gat_layer.2} parent=35 // pred_check
          %p765 = pneg %p136
        $region54: #{gat_layer.2} parent=35 // pred_check_branch
          %767 = sbr.rel (%p765) target = $region56
        $region55: #{gat_layer.2} parent=35 // pred_region
          %s768 = smul.u32 16, %s29
          %s770 = ssub.s32 1024, 1024
          %771 = vsyncadd %s751, %s770
          %s772 = smul.addr %s768, 64
          %s773 = scalar_lea.hbm %s4, %s772
          %s774 = sshll.u32 %s754, 4
          %s775 = int_to_ptr.vmem [resolvable:$true] %s774
          %780 = dma.vmem_to_hbm [thread:$0]  %s775, 1024, %s773, %s751, 64, 64, 4
        $region56: #{gat_layer.2} parent=35 // pred_fallthru
          _
        // Predicated region
        $region57: #{gat_layer.2} parent=35 // pred_check
          %p781 = pneg %p162
        $region58: #{gat_layer.2} parent=35 // pred_check_branch
          %783 = sbr.rel (%p781) target = $region60
        $region59: #{gat_layer.2} parent=35 // pred_region
          %s784 = smul.u32 16, %s29
          %s786 = ssub.s32 2048, 2048
          %787 = vsyncadd %s756, %s786
          %s788 = smul.addr %s784, 128
          %s789 = scalar_lea.hbm %s5, %s788
          %s790 = sshll.u32 %s759, 4
          %s791 = int_to_ptr.vmem [resolvable:$true] %s790
          %796 = dma.vmem_to_hbm [thread:$0]  %s791, 2048, %s789, %s756, 128, 128, 8
        $region60: #{gat_layer.2} parent=35 // pred_fallthru
          _
        // Predicated region
        $region61: #{gat_layer.2} parent=35 // pred_check
          %p797 = pneg %p188
        $region62: #{gat_layer.2} parent=35 // pred_check_branch
          %799 = sbr.rel (%p797) target = $region64
        $region63: #{gat_layer.2} parent=35 // pred_region
          %s800 = smul.u32 16, %s29
          %s802 = ssub.s32 2048, 2048
          %803 = vsyncadd %s761, %s802
          %s804 = smul.addr %s800, 128
          %s805 = scalar_lea.hbm %s6, %s804
          %s806 = sshll.u32 %s764, 4
          %s807 = int_to_ptr.vmem [resolvable:$true] %s806
          %812 = dma.vmem_to_hbm [thread:$0]  %s807, 2048, %s805, %s761, 128, 128, 8
        $region64: #{gat_layer.2} parent=35 // pred_fallthru
          _
      $region36: #{gat_layer.2} parent=5 // pred_fallthru
        _
      %p813 = scmp.le.s32.totalorder 2, %s24
      // Predicated region
      $region65: #{gat_layer.2} parent=5 // pred_check
        %p814 = pneg %p813
      $region66: #{gat_layer.2} parent=5 // pred_check_branch
        %816 = sbr.rel (%p814) target = $region68
      $region67: #{gat_layer.2} parent=5 // pred_region
        %s817 = ssub.s32 %s24, 2
        // Predicated region
        $region69: #{gat_layer.2} parent=67 // pred_check
          %p818 = pneg %p142
        $region70: #{gat_layer.2} parent=67 // pred_check_branch
          %820 = sbr.rel (%p818) target = $region72
        $region71: #{gat_layer.2} parent=67 // pred_region
          %s821 = sand.u32 %s127, 1
          %s822 = scalar_lea.sflag [#allocation4], %s821
          %s823 = sand.u32 %s127, 1
          %s824 = smul.addr %s823, 64
          %s825 = scalar_lea.vmem [#allocation10], %s824
          %826 = dma.done %s822, 1024
        $region72: #{gat_layer.2} parent=67 // pred_fallthru
          _
        // Predicated region
        $region73: #{gat_layer.2} parent=67 // pred_check
          %p827 = pneg %p168
        $region74: #{gat_layer.2} parent=67 // pred_check_branch
          %829 = sbr.rel (%p827) target = $region76
        $region75: #{gat_layer.2} parent=67 // pred_region
          %s830 = sand.u32 %s30, 1
          %s831 = scalar_lea.sflag [#allocation12], %s830
          %s832 = sand.u32 %s153, 1
          %s833 = smul.addr %s832, 128
          %s834 = scalar_lea.vmem [#allocation11], %s833
          %835 = dma.done %s831, 2048
        $region76: #{gat_layer.2} parent=67 // pred_fallthru
          _
        // Predicated region
        $region77: #{gat_layer.2} parent=67 // pred_check
          %p836 = pneg %p194
        $region78: #{gat_layer.2} parent=67 // pred_check_branch
          %838 = sbr.rel (%p836) target = $region80
        $region79: #{gat_layer.2} parent=67 // pred_region
          %s839 = sand.u32 %s30, 1
          %s840 = scalar_lea.sflag [#allocation12], %s839
          %s841 = sand.u32 %s179, 1
          %s842 = smul.addr %s841, 128
          %s843 = scalar_lea.vmem [#allocation13], %s842
          %844 = dma.done %s840, 2048
        $region80: #{gat_layer.2} parent=67 // pred_fallthru
          _
      $region68: #{gat_layer.2} parent=5 // pred_fallthru
        _
    $region6: #{gat_layer.2} parent=1 // loop_footer
      %s28 = sadd.s32 1, %s24
    $region7: #{gat_layer.2} parent=1 // loop_footer_branch
      %23 = sbr.rel target = $region3
    $region8: #{gat_layer.2} parent=1 // loop_exit
      _
    %845 = vsyncpa [#allocation3], 1
    %s846 = scalar_lea.sflag [#allocation3], 1
    %847 = vsyncpa %s846, 1
    %848 = vsyncpa [#allocation6], 1
    %849 = vsyncpa [#allocation9], 1
    %850 = vsyncpa [#allocation4], 1
    %s851 = scalar_lea.sflag [#allocation4], 1
    %852 = vsyncpa %s851, 1
    %853 = vsyncpa [#allocation12], 1
    %s854 = scalar_lea.sflag [#allocation12], 1
    %855 = vsyncpa %s854, 1

</llo_original>
